<compile_context>
chip_gen: v7x
topology: tpu7x:2x2x1
jax: 0.10.0
libtpu: 0.0.40
codegen_flags: <defaults>
</compile_context>

<pallas_src>
import functools

import jax
import jax.numpy as jnp
from jax import lax
from jax.experimental import pallas as pl
from jax.experimental.pallas import tpu as pltpu


_ON_TPU = jax.default_backend() == "tpu"


def _roll_lanes(a, shift):
    """Circular roll along the last (pixel/lane) axis, jnp.roll semantics.

    On TPU this is the XLU lane rotation (separate issue slot from the VPU); the
    jnp.roll fallback keeps the kernel lowerable on the CPU/interpret path where
    TPU-only primitives have no lowering.
    """
    if _ON_TPU:
        return pltpu.roll(a, shift=shift, axis=1)
    return jnp.roll(a, shift, axis=1)


def _nca_fused_kernel(x_ref, fire_ref, weff_ref, b1_ref, w2_ref, o_ref, *,
                      steps, width):
    """Runs all `steps` NCA updates for one batch element.

    x_ref    : (C, H*W)     f32  initial cell state (channels on sublanes, pixels on lanes)
    fire_ref : (steps, H*W) f32  precomputed per-step stochastic fire masks (0./1.)
    weff_ref : (HID, 9*C)   bf16 depthwise 3x3 taps folded into the first 1x1 conv
    b1_ref   : (HID, 1)     f32  first 1x1 conv bias
    w2_ref   : (C, HID)     bf16 second 1x1 conv weight, image-channel rows pre-zeroed
    o_ref    : (C, H*W)     f32  final cell state
    """
    C, HW = x_ref.shape
    W = width

    # ---- loop-invariant operands / masks, hoisted out of the step loop ----
    w_eff = weff_ref[...]                                   # (HID, 9*C) bf16
    w2 = w2_ref[...]                                        # (C, HID)   bf16
    b1 = b1_ref[...]                                        # (HID, 1)   f32
    col = lax.broadcasted_iota(jnp.int32, (C, HW), 1) % W
    is_first_col = col == 0                                 # pre-broadcast (C, HW)
    is_last_col = col == W - 1

    def one_step(step, x):
        # -- column-neighbour maps (dx = +/-1): global pixel roll + W-wrap fix --
        x_e = jnp.where(is_last_col,
                        _roll_lanes(x, (W - 1) % HW),
                        _roll_lanes(x, (-1) % HW))          # value at (y, (x+1) mod W)
        x_w = jnp.where(is_first_col,
                        _roll_lanes(x, (1 - W) % HW),
                        _roll_lanes(x, 1))                  # value at (y, (x-1) mod W)
        x_cols = {-1: x_w, 0: x, 1: x_e}

        # -- 9 shifted maps, tap order k = 3*(dy+1) + (dx+1); a global roll by dy*W
        #    is exact for the H wrap (mod H*W). --
        slabs = []
        for dy in (-1, 0, 1):
            row_shift = (-dy * W) % HW
            for dx in (-1, 0, 1):
                base = x_cols[dx]
                slabs.append(base if dy == 0 else _roll_lanes(base, row_shift))
        p_all = jnp.concatenate(slabs, axis=0).astype(jnp.bfloat16)     # (9*C, HW)

        # -- perceive + network[0] fused as ONE MXU matmul (K = 9*C), bias, ReLU --
        h = jnp.dot(w_eff, p_all, preferred_element_type=jnp.float32)   # (HID, HW)
        h = jnp.maximum(h + b1, 0.0)
        # -- network[2]: 1x1 conv, no bias; immutable image channels folded into
        #    the pre-zeroed rows of w2 --
        dxv = jnp.dot(w2, h.astype(jnp.bfloat16),
                      preferred_element_type=jnp.float32)               # (C, HW)

        # -- stochastic per-pixel fire mask (precomputed host-side, shared over C) --
        fire = fire_ref[pl.ds(step, 1), :]                              # (1, HW)
        # TODO(synk): dx_noise=0.0 (default) -> additive noise term is exactly zero, omitted.
        # TODO(synk): use_alive_mask=False (default) -> max-pool alive masking omitted.
        return x + dxv * fire

    x = x_ref[...]
    if steps <= 16:
        # Full unroll (static trip count): the scheduler sees across step boundaries so
        # MXU work of step i overlaps the rolls/selects of step i+1; state stays in vregs.
        for step in range(steps):
            x = one_step(step, x)
    else:
        x = lax.fori_loop(0, steps, one_step, x, unroll=2)
    o_ref[...] = x


def nca_forward(x_nchw, filters, w1, b1, w2, *, steps, fire_rate,
                num_image_channels, immutable_image_channels=True, rng_key=None):
    """Equivalent of BasicNCAModel.forward (autostepper=None path).

    x_nchw  : (B, C, H, W)    input cell state (PyTorch NCHW convention)
    filters : (F, C, 3, 3)    depthwise conv weights (stacked PyTorch weight[:, 0])
    w1      : (HID, (F+1)*C)  network[0] 1x1 conv weight
    b1      : (HID,)          network[0] bias
    w2      : (C, HID)        network[2] 1x1 conv weight (PyTorch zero-inits this)
    Returns NHWC output, matching the module's trailing x.permute(0, 2, 3, 1).
    """
    # TODO(synk): autostepper (data-dependent early-stop loop) not implemented.
    # TODO(synk): use_temporal_encoding=False (default) -> temporal channel omitted.
    # TODO(synk): for general H, W pad the pixel axis to a multiple of 128 lanes and fold
    #             the pad columns into the boundary masks (demo HW=256 is already lane-dense).
    B, C, H, W = x_nchw.shape
    HW = H * W
    Fn = filters.shape[0]
    HID = w1.shape[0]

    x2 = x_nchw.astype(jnp.float32).reshape(B, C, HW)

    # ---- fold the depthwise 3x3 taps into the first 1x1 conv ----
    #   hidden = w1 @ concat([x, f_1*x, ..., f_F*x]) + b1
    #          = sum_k W_eff[:, k*C:(k+1)*C] @ shift_k(x) + b1
    #   W_eff[h, k*C + c] = sum_f w1[h, (f+1)C + c] * filt[f, c, ky, kx] + [k==4] * w1[h, c]
    w1 = w1.astype(jnp.float32)
    filters = filters.astype(jnp.float32)
    w1_f = w1[:, C:].reshape(HID, Fn, C)
    w_eff = jnp.einsum('hfc,fcyx->hyxc', w1_f, filters)             # (HID, 3, 3, C)
    w_eff = w_eff.at[:, 1, 1, :].add(w1[:, :C])                     # identity slab -> center tap
    w_eff = w_eff.reshape(HID, 9 * C).astype(jnp.bfloat16)

    # Fold `dx[:, :num_image_channels] *= 0` into zeroed rows of w2 (dx = w2 @ hidden).
    w2 = w2.astype(jnp.float32)
    if immutable_image_channels:
        w2 = w2.at[:num_image_channels, :].set(0.0)
    w2 = w2.astype(jnp.bfloat16)

    b1c = b1.astype(jnp.float32).reshape(HID, 1)

    # Per-step per-pixel stochastic fire mask (torch.rand([B,1,H,W]) < fire_rate, fresh each
    # step), precomputed host-side so no TPU-only PRNG primitive is needed in the kernel.
    # TODO(synk): for very large `steps` * H*W, stream/bit-pack this instead of one VMEM block.
    if rng_key is None:
        rng_key = jax.random.PRNGKey(0)
    fire = (jax.random.uniform(rng_key, (B, steps, HW)) < fire_rate).astype(jnp.float32)

    kernel = functools.partial(_nca_fused_kernel, steps=int(steps), width=W)

    # TODO(synk): for B=1 on v7x (2 TensorCores), add a second parallel axis (split H with a
    #             one-row halo exchange) so both cores get work; B>=2 is balanced as-is.
    out = pl.pallas_call(
        kernel,
        out_shape=jax.ShapeDtypeStruct((B, C, HW), jnp.float32),
        grid_spec=pltpu.PrefetchScalarGridSpec(
            num_scalar_prefetch=0,
            grid=(B,),
            in_specs=[
                pl.BlockSpec((None, C, HW), lambda b: (b, 0, 0)),        # x
                pl.BlockSpec((None, steps, HW), lambda b: (b, 0, 0)),    # fire masks
                pl.BlockSpec((HID, 9 * C), lambda b: (0, 0)),            # W_eff (bf16)
                pl.BlockSpec((HID, 1), lambda b: (0, 0)),                # b1
                pl.BlockSpec((C, HID), lambda b: (0, 0)),                # w2 (rows zeroed, bf16)
            ],
            out_specs=pl.BlockSpec((None, C, HW), lambda b: (b, 0, 0)),
        ),
        compiler_params=pltpu.CompilerParams(
            dimension_semantics=("parallel",)),
    )(x2, fire, w_eff, b1c, w2)

    # Final permute(0, 2, 3, 1): BCHW -> BHWC, matching the PyTorch module's return.
    return out.reshape(B, C, H, W).transpose(0, 2, 3, 1)


if __name__ == "__main__":
    # Module hyper-parameters (consistent with BasicNCAModel.__init__, small sizes):
    num_image_channels = 3
    num_hidden_channels = 4
    num_output_channels = 1
    C = num_image_channels + num_hidden_channels + num_output_channels   # 8
    hidden_size = 32
    num_learned_filters = 2
    fire_rate = 0.5
    B, H, W = 2, 16, 16
    steps = 4

    key = jax.random.PRNGKey(0)
    k_x, k_f, k_w1, k_b1, k_w2, k_fire = jax.random.split(key, 6)

    # Input cell state, NCHW like the PyTorch module.
    x = jax.random.normal(k_x, (B, C, H, W), jnp.float32)

    # Synthetic parameters (shapes from __init__):
    #  - 2x depthwise Conv2d(C, C, 3, groups=C, bias=False, padding_mode='circular'):
    #    weight (C, 1, 3, 3) each -> stacked & squeezed to (F, C, 3, 3)
    #  - Conv2d(3C, hidden, 1, bias=True); Conv2d(hidden, C, 1, bias=False).
    # PyTorch zero-inits the final conv; small random values are used here so the kernel's
    # hot path is actually exercised.
    filters = jax.random.normal(k_f, (num_learned_filters, C, 3, 3), jnp.float32) * 0.1
    w1 = jax.random.normal(k_w1, (hidden_size, (num_learned_filters + 1) * C),
                           jnp.float32) * 0.1
    b1 = jax.random.normal(k_b1, (hidden_size,), jnp.float32) * 0.1
    w2 = jax.random.normal(k_w2, (C, hidden_size), jnp.float32) * 0.1

    out = nca_forward(x, filters, w1, b1, w2, steps=steps, fire_rate=fire_rate,
                      num_image_channels=num_image_channels, rng_key=k_fire)
    out = jax.block_until_ready(out)

    assert out.shape == (B, H, W, C), out.shape
    assert bool(jnp.all(jnp.isfinite(out)))
    # Image channels are immutable -> must match the input exactly.
    img_ref = jnp.transpose(x, (0, 2, 3, 1))[..., :num_image_channels]
    assert bool(jnp.allclose(out[..., :num_image_channels], img_ref)), "image channels changed"
    print("KERNEL_OK")
</pallas_src>

<mosaic_0001>
module attributes {stable_mosaic.version = 11 : i64} {
  func.func @_nca_fused_kernel(%arg0: i32, %arg1: memref<1x8x256xf32, #tpu.memory_space<vmem>>, %arg2: memref<1x4x256xf32, #tpu.memory_space<vmem>>, %arg3: memref<32x72xbf16, #tpu.memory_space<vmem>>, %arg4: memref<32x1xf32, #tpu.memory_space<vmem>>, %arg5: memref<8x32xbf16, #tpu.memory_space<vmem>>, %arg6: memref<1x8x256xf32, #tpu.memory_space<vmem>>) attributes {dimension_semantics = [#tpu.dimension_semantics<parallel>], iteration_bounds = array<i64: 2>, scalar_prefetch = 0 : i64, scratch_operands = 0 : i64, tpu.core_type = #tpu.core_type<tc>, window_params = [{transform_indices = @transform_0, window_bounds = array<i64: 1, 8, 256>}, {transform_indices = @transform_1, window_bounds = array<i64: 1, 4, 256>}, {pipeline_mode = #tpu.pipeline_mode<synchronous>, transform_indices = @transform_2, window_bounds = array<i64: 32, 72>}, {pipeline_mode = #tpu.pipeline_mode<synchronous>, transform_indices = @transform_3, window_bounds = array<i64: 32, 1>}, {pipeline_mode = #tpu.pipeline_mode<synchronous>, transform_indices = @transform_4, window_bounds = array<i64: 8, 32>}, {transform_indices = @transform_5, window_bounds = array<i64: 1, 8, 256>}]} {
    %c0 = arith.constant 0 : index
    %c0_0 = arith.constant 0 : index
    %0 = vector.load %arg3[%c0, %c0_0] : memref<32x72xbf16, #tpu.memory_space<vmem>>, vector<32x72xbf16>
    %c0_1 = arith.constant 0 : index
    %c0_2 = arith.constant 0 : index
    %1 = vector.load %arg5[%c0_1, %c0_2] : memref<8x32xbf16, #tpu.memory_space<vmem>>, vector<8x32xbf16>
    %c0_3 = arith.constant 0 : index
    %c0_4 = arith.constant 0 : index
    %2 = vector.load %arg4[%c0_3, %c0_4] : memref<32x1xf32, #tpu.memory_space<vmem>>, vector<32x1xf32>
    %3 = tpu.iota {dimensions = array<i32: 1>} : vector<8x256xi32>
    %c16_i32 = arith.constant 16 : i32
    %c0_i32 = arith.constant 0 : i32
    %4 = arith.cmpi eq, %c16_i32, %c0_i32 : i32
    %c1_i32 = arith.constant 1 : i32
    %5 = arith.select %4, %c1_i32, %c16_i32 : i32
    %6 = vector.broadcast %5 : i32 to vector<8x256xi32>
    %7 = arith.remsi %3, %6 : vector<8x256xi32>
    %c0_i32_5 = arith.constant 0 : i32
    %8 = vector.broadcast %c0_i32_5 : i32 to vector<8x256xi32>
    %9 = arith.cmpi ne, %7, %8 : vector<8x256xi32>
    %c0_i32_6 = arith.constant 0 : i32
    %10 = vector.broadcast %c0_i32_6 : i32 to vector<8x256xi32>
    %11 = arith.cmpi slt, %7, %10 : vector<8x256xi32>
    %c0_i32_7 = arith.constant 0 : i32
    %12 = arith.cmpi slt, %5, %c0_i32_7 : i32
    %13 = vector.broadcast %12 : i1 to vector<8x256xi1>
    %14 = vector.broadcast %13 : vector<8x256xi1> to vector<8x256xi1>
    %15 = arith.xori %11, %14 : vector<8x256xi1>
    %16 = arith.andi %15, %9 : vector<8x256xi1>
    %17 = vector.broadcast %5 : i32 to vector<8x256xi32>
    %18 = arith.addi %7, %17 : vector<8x256xi32>
    %19 = arith.select %16, %18, %7 : vector<8x256xi1>, vector<8x256xi32>
    %c0_i32_8 = arith.constant 0 : i32
    %20 = vector.broadcast %c0_i32_8 : i32 to vector<8x256xi32>
    %21 = arith.cmpi eq, %19, %20 : vector<8x256xi32>
    %c15_i32 = arith.constant 15 : i32
    %22 = vector.broadcast %c15_i32 : i32 to vector<8x256xi32>
    %23 = arith.cmpi eq, %19, %22 : vector<8x256xi32>
    %c0_9 = arith.constant 0 : index
    %c0_10 = arith.constant 0 : index
    %c0_11 = arith.constant 0 : index
    %24 = vector.load %arg1[%c0_9, %c0_10, %c0_11] : memref<1x8x256xf32, #tpu.memory_space<vmem>>, vector<1x8x256xf32>
    %25 = vector.shape_cast %24 : vector<1x8x256xf32> to vector<8x256xf32>
    %26 = vector.extract_strided_slice %25 {offsets = [0, 241], sizes = [8, 15], strides = [1, 1]} : vector<8x256xf32> to vector<8x15xf32>
    %27 = vector.extract_strided_slice %25 {offsets = [0, 0], sizes = [8, 241], strides = [1, 1]} : vector<8x256xf32> to vector<8x241xf32>
    %28 = tpu.concatenate %26, %27 in 1 : vector<8x15xf32>, vector<8x241xf32> -> vector<8x256xf32>
    %29 = vector.extract_strided_slice %25 {offsets = [0, 1], sizes = [8, 255], strides = [1, 1]} : vector<8x256xf32> to vector<8x255xf32>
    %30 = vector.extract_strided_slice %25 {offsets = [0, 0], sizes = [8, 1], strides = [1, 1]} : vector<8x256xf32> to vector<8x1xf32>
    %31 = tpu.concatenate %29, %30 in 1 : vector<8x255xf32>, vector<8x1xf32> -> vector<8x256xf32>
    %32 = arith.select %23, %28, %31 : vector<8x256xi1>, vector<8x256xf32>
    %33 = vector.extract_strided_slice %25 {offsets = [0, 15], sizes = [8, 241], strides = [1, 1]} : vector<8x256xf32> to vector<8x241xf32>
    %34 = vector.extract_strided_slice %25 {offsets = [0, 0], sizes = [8, 15], strides = [1, 1]} : vector<8x256xf32> to vector<8x15xf32>
    %35 = tpu.concatenate %33, %34 in 1 : vector<8x241xf32>, vector<8x15xf32> -> vector<8x256xf32>
    %36 = vector.extract_strided_slice %25 {offsets = [0, 255], sizes = [8, 1], strides = [1, 1]} : vector<8x256xf32> to vector<8x1xf32>
    %37 = vector.extract_strided_slice %25 {offsets = [0, 0], sizes = [8, 255], strides = [1, 1]} : vector<8x256xf32> to vector<8x255xf32>
    %38 = tpu.concatenate %36, %37 in 1 : vector<8x1xf32>, vector<8x255xf32> -> vector<8x256xf32>
    %39 = arith.select %21, %35, %38 : vector<8x256xi1>, vector<8x256xf32>
    %40 = vector.extract_strided_slice %39 {offsets = [0, 240], sizes = [8, 16], strides = [1, 1]} : vector<8x256xf32> to vector<8x16xf32>
    %41 = vector.extract_strided_slice %39 {offsets = [0, 0], sizes = [8, 240], strides = [1, 1]} : vector<8x256xf32> to vector<8x240xf32>
    %42 = tpu.concatenate %40, %41 in 1 : vector<8x16xf32>, vector<8x240xf32> -> vector<8x256xf32>
    %43 = vector.extract_strided_slice %25 {offsets = [0, 240], sizes = [8, 16], strides = [1, 1]} : vector<8x256xf32> to vector<8x16xf32>
    %44 = vector.extract_strided_slice %25 {offsets = [0, 0], sizes = [8, 240], strides = [1, 1]} : vector<8x256xf32> to vector<8x240xf32>
    %45 = tpu.concatenate %43, %44 in 1 : vector<8x16xf32>, vector<8x240xf32> -> vector<8x256xf32>
    %46 = vector.extract_strided_slice %32 {offsets = [0, 240], sizes = [8, 16], strides = [1, 1]} : vector<8x256xf32> to vector<8x16xf32>
    %47 = vector.extract_strided_slice %32 {offsets = [0, 0], sizes = [8, 240], strides = [1, 1]} : vector<8x256xf32> to vector<8x240xf32>
    %48 = tpu.concatenate %46, %47 in 1 : vector<8x16xf32>, vector<8x240xf32> -> vector<8x256xf32>
    %49 = vector.extract_strided_slice %39 {offsets = [0, 16], sizes = [8, 240], strides = [1, 1]} : vector<8x256xf32> to vector<8x240xf32>
    %50 = vector.extract_strided_slice %39 {offsets = [0, 0], sizes = [8, 16], strides = [1, 1]} : vector<8x256xf32> to vector<8x16xf32>
    %51 = tpu.concatenate %49, %50 in 1 : vector<8x240xf32>, vector<8x16xf32> -> vector<8x256xf32>
    %52 = vector.extract_strided_slice %25 {offsets = [0, 16], sizes = [8, 240], strides = [1, 1]} : vector<8x256xf32> to vector<8x240xf32>
    %53 = vector.extract_strided_slice %25 {offsets = [0, 0], sizes = [8, 16], strides = [1, 1]} : vector<8x256xf32> to vector<8x16xf32>
    %54 = tpu.concatenate %52, %53 in 1 : vector<8x240xf32>, vector<8x16xf32> -> vector<8x256xf32>
    %55 = vector.extract_strided_slice %32 {offsets = [0, 16], sizes = [8, 240], strides = [1, 1]} : vector<8x256xf32> to vector<8x240xf32>
    %56 = vector.extract_strided_slice %32 {offsets = [0, 0], sizes = [8, 16], strides = [1, 1]} : vector<8x256xf32> to vector<8x16xf32>
    %57 = tpu.concatenate %55, %56 in 1 : vector<8x240xf32>, vector<8x16xf32> -> vector<8x256xf32>
    %58 = tpu.concatenate %42, %45, %48, %39, %25, %32, %51, %54, %57 in 0 : vector<8x256xf32>, vector<8x256xf32>, vector<8x256xf32>, vector<8x256xf32>, vector<8x256xf32>, vector<8x256xf32>, vector<8x256xf32>, vector<8x256xf32>, vector<8x256xf32> -> vector<72x256xf32>
    %59 = arith.truncf %58 : vector<72x256xf32> to vector<72x256xbf16>
    %cst = arith.constant dense<0.000000e+00> : vector<32x256xf32>
    %60 = tpu.matmul %0, %59, %cst {dimension_numbers = #tpu.dot_dimension_numbers<[1], [0], [0], [1], [0, 0, 1, 1], [], []>} : vector<32x72xbf16>, vector<72x256xbf16>, vector<32x256xf32> -> vector<32x256xf32>
    %61 = vector.broadcast %2 : vector<32x1xf32> to vector<32x256xf32>
    %62 = arith.addf %60, %61 : vector<32x256xf32>
    %cst_12 = arith.constant 0.000000e+00 : f32
    %63 = vector.broadcast %cst_12 : f32 to vector<32x256xf32>
    %64 = arith.maximumf %62, %63 : vector<32x256xf32>
    %65 = arith.truncf %64 : vector<32x256xf32> to vector<32x256xbf16>
    %cst_13 = arith.constant dense<0.000000e+00> : vector<8x256xf32>
    %66 = tpu.matmul %1, %65, %cst_13 {dimension_numbers = #tpu.dot_dimension_numbers<[1], [0], [0], [1], [0, 0, 1, 1], [], []>} : vector<8x32xbf16>, vector<32x256xbf16>, vector<8x256xf32> -> vector<8x256xf32>
    %c0_14 = arith.constant 0 : index
    %c0_15 = arith.constant 0 : index
    %c0_16 = arith.constant 0 : index
    %67 = vector.load %arg2[%c0_14, %c0_15, %c0_16] : memref<1x4x256xf32, #tpu.memory_space<vmem>>, vector<1x1x256xf32>
    %68 = vector.shape_cast %67 : vector<1x1x256xf32> to vector<1x256xf32>
    %69 = vector.broadcast %68 : vector<1x256xf32> to vector<8x256xf32>
    %70 = arith.mulf %66, %69 : vector<8x256xf32>
    %71 = arith.addf %25, %70 : vector<8x256xf32>
    %72 = vector.extract_strided_slice %71 {offsets = [0, 241], sizes = [8, 15], strides = [1, 1]} : vector<8x256xf32> to vector<8x15xf32>
    %73 = vector.extract_strided_slice %71 {offsets = [0, 0], sizes = [8, 241], strides = [1, 1]} : vector<8x256xf32> to vector<8x241xf32>
    %74 = tpu.concatenate %72, %73 in 1 : vector<8x15xf32>, vector<8x241xf32> -> vector<8x256xf32>
    %75 = vector.extract_strided_slice %71 {offsets = [0, 1], sizes = [8, 255], strides = [1, 1]} : vector<8x256xf32> to vector<8x255xf32>
    %76 = vector.extract_strided_slice %71 {offsets = [0, 0], sizes = [8, 1], strides = [1, 1]} : vector<8x256xf32> to vector<8x1xf32>
    %77 = tpu.concatenate %75, %76 in 1 : vector<8x255xf32>, vector<8x1xf32> -> vector<8x256xf32>
    %78 = arith.select %23, %74, %77 : vector<8x256xi1>, vector<8x256xf32>
    %79 = vector.extract_strided_slice %71 {offsets = [0, 15], sizes = [8, 241], strides = [1, 1]} : vector<8x256xf32> to vector<8x241xf32>
    %80 = vector.extract_strided_slice %71 {offsets = [0, 0], sizes = [8, 15], strides = [1, 1]} : vector<8x256xf32> to vector<8x15xf32>
    %81 = tpu.concatenate %79, %80 in 1 : vector<8x241xf32>, vector<8x15xf32> -> vector<8x256xf32>
    %82 = vector.extract_strided_slice %71 {offsets = [0, 255], sizes = [8, 1], strides = [1, 1]} : vector<8x256xf32> to vector<8x1xf32>
    %83 = vector.extract_strided_slice %71 {offsets = [0, 0], sizes = [8, 255], strides = [1, 1]} : vector<8x256xf32> to vector<8x255xf32>
    %84 = tpu.concatenate %82, %83 in 1 : vector<8x1xf32>, vector<8x255xf32> -> vector<8x256xf32>
    %85 = arith.select %21, %81, %84 : vector<8x256xi1>, vector<8x256xf32>
    %86 = vector.extract_strided_slice %85 {offsets = [0, 240], sizes = [8, 16], strides = [1, 1]} : vector<8x256xf32> to vector<8x16xf32>
    %87 = vector.extract_strided_slice %85 {offsets = [0, 0], sizes = [8, 240], strides = [1, 1]} : vector<8x256xf32> to vector<8x240xf32>
    %88 = tpu.concatenate %86, %87 in 1 : vector<8x16xf32>, vector<8x240xf32> -> vector<8x256xf32>
    %89 = vector.extract_strided_slice %71 {offsets = [0, 240], sizes = [8, 16], strides = [1, 1]} : vector<8x256xf32> to vector<8x16xf32>
    %90 = vector.extract_strided_slice %71 {offsets = [0, 0], sizes = [8, 240], strides = [1, 1]} : vector<8x256xf32> to vector<8x240xf32>
    %91 = tpu.concatenate %89, %90 in 1 : vector<8x16xf32>, vector<8x240xf32> -> vector<8x256xf32>
    %92 = vector.extract_strided_slice %78 {offsets = [0, 240], sizes = [8, 16], strides = [1, 1]} : vector<8x256xf32> to vector<8x16xf32>
    %93 = vector.extract_strided_slice %78 {offsets = [0, 0], sizes = [8, 240], strides = [1, 1]} : vector<8x256xf32> to vector<8x240xf32>
    %94 = tpu.concatenate %92, %93 in 1 : vector<8x16xf32>, vector<8x240xf32> -> vector<8x256xf32>
    %95 = vector.extract_strided_slice %85 {offsets = [0, 16], sizes = [8, 240], strides = [1, 1]} : vector<8x256xf32> to vector<8x240xf32>
    %96 = vector.extract_strided_slice %85 {offsets = [0, 0], sizes = [8, 16], strides = [1, 1]} : vector<8x256xf32> to vector<8x16xf32>
    %97 = tpu.concatenate %95, %96 in 1 : vector<8x240xf32>, vector<8x16xf32> -> vector<8x256xf32>
    %98 = vector.extract_strided_slice %71 {offsets = [0, 16], sizes = [8, 240], strides = [1, 1]} : vector<8x256xf32> to vector<8x240xf32>
    %99 = vector.extract_strided_slice %71 {offsets = [0, 0], sizes = [8, 16], strides = [1, 1]} : vector<8x256xf32> to vector<8x16xf32>
    %100 = tpu.concatenate %98, %99 in 1 : vector<8x240xf32>, vector<8x16xf32> -> vector<8x256xf32>
    %101 = vector.extract_strided_slice %78 {offsets = [0, 16], sizes = [8, 240], strides = [1, 1]} : vector<8x256xf32> to vector<8x240xf32>
    %102 = vector.extract_strided_slice %78 {offsets = [0, 0], sizes = [8, 16], strides = [1, 1]} : vector<8x256xf32> to vector<8x16xf32>
    %103 = tpu.concatenate %101, %102 in 1 : vector<8x240xf32>, vector<8x16xf32> -> vector<8x256xf32>
    %104 = tpu.concatenate %88, %91, %94, %85, %71, %78, %97, %100, %103 in 0 : vector<8x256xf32>, vector<8x256xf32>, vector<8x256xf32>, vector<8x256xf32>, vector<8x256xf32>, vector<8x256xf32>, vector<8x256xf32>, vector<8x256xf32>, vector<8x256xf32> -> vector<72x256xf32>
    %105 = arith.truncf %104 : vector<72x256xf32> to vector<72x256xbf16>
    %cst_17 = arith.constant dense<0.000000e+00> : vector<32x256xf32>
    %106 = tpu.matmul %0, %105, %cst_17 {dimension_numbers = #tpu.dot_dimension_numbers<[1], [0], [0], [1], [0, 0, 1, 1], [], []>} : vector<32x72xbf16>, vector<72x256xbf16>, vector<32x256xf32> -> vector<32x256xf32>
    %107 = vector.broadcast %2 : vector<32x1xf32> to vector<32x256xf32>
    %108 = arith.addf %106, %107 : vector<32x256xf32>
    %cst_18 = arith.constant 0.000000e+00 : f32
    %109 = vector.broadcast %cst_18 : f32 to vector<32x256xf32>
    %110 = arith.maximumf %108, %109 : vector<32x256xf32>
    %111 = arith.truncf %110 : vector<32x256xf32> to vector<32x256xbf16>
    %cst_19 = arith.constant dense<0.000000e+00> : vector<8x256xf32>
    %112 = tpu.matmul %1, %111, %cst_19 {dimension_numbers = #tpu.dot_dimension_numbers<[1], [0], [0], [1], [0, 0, 1, 1], [], []>} : vector<8x32xbf16>, vector<32x256xbf16>, vector<8x256xf32> -> vector<8x256xf32>
    %c0_20 = arith.constant 0 : index
    %c1 = arith.constant 1 : index
    %c0_21 = arith.constant 0 : index
    %113 = vector.load %arg2[%c0_20, %c1, %c0_21] : memref<1x4x256xf32, #tpu.memory_space<vmem>>, vector<1x1x256xf32>
    %114 = vector.shape_cast %113 : vector<1x1x256xf32> to vector<1x256xf32>
    %115 = vector.broadcast %114 : vector<1x256xf32> to vector<8x256xf32>
    %116 = arith.mulf %112, %115 : vector<8x256xf32>
    %117 = arith.addf %71, %116 : vector<8x256xf32>
    %118 = vector.extract_strided_slice %117 {offsets = [0, 241], sizes = [8, 15], strides = [1, 1]} : vector<8x256xf32> to vector<8x15xf32>
    %119 = vector.extract_strided_slice %117 {offsets = [0, 0], sizes = [8, 241], strides = [1, 1]} : vector<8x256xf32> to vector<8x241xf32>
    %120 = tpu.concatenate %118, %119 in 1 : vector<8x15xf32>, vector<8x241xf32> -> vector<8x256xf32>
    %121 = vector.extract_strided_slice %117 {offsets = [0, 1], sizes = [8, 255], strides = [1, 1]} : vector<8x256xf32> to vector<8x255xf32>
    %122 = vector.extract_strided_slice %117 {offsets = [0, 0], sizes = [8, 1], strides = [1, 1]} : vector<8x256xf32> to vector<8x1xf32>
    %123 = tpu.concatenate %121, %122 in 1 : vector<8x255xf32>, vector<8x1xf32> -> vector<8x256xf32>
    %124 = arith.select %23, %120, %123 : vector<8x256xi1>, vector<8x256xf32>
    %125 = vector.extract_strided_slice %117 {offsets = [0, 15], sizes = [8, 241], strides = [1, 1]} : vector<8x256xf32> to vector<8x241xf32>
    %126 = vector.extract_strided_slice %117 {offsets = [0, 0], sizes = [8, 15], strides = [1, 1]} : vector<8x256xf32> to vector<8x15xf32>
    %127 = tpu.concatenate %125, %126 in 1 : vector<8x241xf32>, vector<8x15xf32> -> vector<8x256xf32>
    %128 = vector.extract_strided_slice %117 {offsets = [0, 255], sizes = [8, 1], strides = [1, 1]} : vector<8x256xf32> to vector<8x1xf32>
    %129 = vector.extract_strided_slice %117 {offsets = [0, 0], sizes = [8, 255], strides = [1, 1]} : vector<8x256xf32> to vector<8x255xf32>
    %130 = tpu.concatenate %128, %129 in 1 : vector<8x1xf32>, vector<8x255xf32> -> vector<8x256xf32>
    %131 = arith.select %21, %127, %130 : vector<8x256xi1>, vector<8x256xf32>
    %132 = vector.extract_strided_slice %131 {offsets = [0, 240], sizes = [8, 16], strides = [1, 1]} : vector<8x256xf32> to vector<8x16xf32>
    %133 = vector.extract_strided_slice %131 {offsets = [0, 0], sizes = [8, 240], strides = [1, 1]} : vector<8x256xf32> to vector<8x240xf32>
    %134 = tpu.concatenate %132, %133 in 1 : vector<8x16xf32>, vector<8x240xf32> -> vector<8x256xf32>
    %135 = vector.extract_strided_slice %117 {offsets = [0, 240], sizes = [8, 16], strides = [1, 1]} : vector<8x256xf32> to vector<8x16xf32>
    %136 = vector.extract_strided_slice %117 {offsets = [0, 0], sizes = [8, 240], strides = [1, 1]} : vector<8x256xf32> to vector<8x240xf32>
    %137 = tpu.concatenate %135, %136 in 1 : vector<8x16xf32>, vector<8x240xf32> -> vector<8x256xf32>
    %138 = vector.extract_strided_slice %124 {offsets = [0, 240], sizes = [8, 16], strides = [1, 1]} : vector<8x256xf32> to vector<8x16xf32>
    %139 = vector.extract_strided_slice %124 {offsets = [0, 0], sizes = [8, 240], strides = [1, 1]} : vector<8x256xf32> to vector<8x240xf32>
    %140 = tpu.concatenate %138, %139 in 1 : vector<8x16xf32>, vector<8x240xf32> -> vector<8x256xf32>
    %141 = vector.extract_strided_slice %131 {offsets = [0, 16], sizes = [8, 240], strides = [1, 1]} : vector<8x256xf32> to vector<8x240xf32>
    %142 = vector.extract_strided_slice %131 {offsets = [0, 0], sizes = [8, 16], strides = [1, 1]} : vector<8x256xf32> to vector<8x16xf32>
    %143 = tpu.concatenate %141, %142 in 1 : vector<8x240xf32>, vector<8x16xf32> -> vector<8x256xf32>
    %144 = vector.extract_strided_slice %117 {offsets = [0, 16], sizes = [8, 240], strides = [1, 1]} : vector<8x256xf32> to vector<8x240xf32>
    %145 = vector.extract_strided_slice %117 {offsets = [0, 0], sizes = [8, 16], strides = [1, 1]} : vector<8x256xf32> to vector<8x16xf32>
    %146 = tpu.concatenate %144, %145 in 1 : vector<8x240xf32>, vector<8x16xf32> -> vector<8x256xf32>
    %147 = vector.extract_strided_slice %124 {offsets = [0, 16], sizes = [8, 240], strides = [1, 1]} : vector<8x256xf32> to vector<8x240xf32>
    %148 = vector.extract_strided_slice %124 {offsets = [0, 0], sizes = [8, 16], strides = [1, 1]} : vector<8x256xf32> to vector<8x16xf32>
    %149 = tpu.concatenate %147, %148 in 1 : vector<8x240xf32>, vector<8x16xf32> -> vector<8x256xf32>
    %150 = tpu.concatenate %134, %137, %140, %131, %117, %124, %143, %146, %149 in 0 : vector<8x256xf32>, vector<8x256xf32>, vector<8x256xf32>, vector<8x256xf32>, vector<8x256xf32>, vector<8x256xf32>, vector<8x256xf32>, vector<8x256xf32>, vector<8x256xf32> -> vector<72x256xf32>
    %151 = arith.truncf %150 : vector<72x256xf32> to vector<72x256xbf16>
    %cst_22 = arith.constant dense<0.000000e+00> : vector<32x256xf32>
    %152 = tpu.matmul %0, %151, %cst_22 {dimension_numbers = #tpu.dot_dimension_numbers<[1], [0], [0], [1], [0, 0, 1, 1], [], []>} : vector<32x72xbf16>, vector<72x256xbf16>, vector<32x256xf32> -> vector<32x256xf32>
    %153 = vector.broadcast %2 : vector<32x1xf32> to vector<32x256xf32>
    %154 = arith.addf %152, %153 : vector<32x256xf32>
    %cst_23 = arith.constant 0.000000e+00 : f32
    %155 = vector.broadcast %cst_23 : f32 to vector<32x256xf32>
    %156 = arith.maximumf %154, %155 : vector<32x256xf32>
    %157 = arith.truncf %156 : vector<32x256xf32> to vector<32x256xbf16>
    %cst_24 = arith.constant dense<0.000000e+00> : vector<8x256xf32>
    %158 = tpu.matmul %1, %157, %cst_24 {dimension_numbers = #tpu.dot_dimension_numbers<[1], [0], [0], [1], [0, 0, 1, 1], [], []>} : vector<8x32xbf16>, vector<32x256xbf16>, vector<8x256xf32> -> vector<8x256xf32>
    %c0_25 = arith.constant 0 : index
    %c2 = arith.constant 2 : index
    %c0_26 = arith.constant 0 : index
    %159 = vector.load %arg2[%c0_25, %c2, %c0_26] : memref<1x4x256xf32, #tpu.memory_space<vmem>>, vector<1x1x256xf32>
    %160 = vector.shape_cast %159 : vector<1x1x256xf32> to vector<1x256xf32>
    %161 = vector.broadcast %160 : vector<1x256xf32> to vector<8x256xf32>
    %162 = arith.mulf %158, %161 : vector<8x256xf32>
    %163 = arith.addf %117, %162 : vector<8x256xf32>
    %164 = vector.extract_strided_slice %163 {offsets = [0, 241], sizes = [8, 15], strides = [1, 1]} : vector<8x256xf32> to vector<8x15xf32>
    %165 = vector.extract_strided_slice %163 {offsets = [0, 0], sizes = [8, 241], strides = [1, 1]} : vector<8x256xf32> to vector<8x241xf32>
    %166 = tpu.concatenate %164, %165 in 1 : vector<8x15xf32>, vector<8x241xf32> -> vector<8x256xf32>
    %167 = vector.extract_strided_slice %163 {offsets = [0, 1], sizes = [8, 255], strides = [1, 1]} : vector<8x256xf32> to vector<8x255xf32>
    %168 = vector.extract_strided_slice %163 {offsets = [0, 0], sizes = [8, 1], strides = [1, 1]} : vector<8x256xf32> to vector<8x1xf32>
    %169 = tpu.concatenate %167, %168 in 1 : vector<8x255xf32>, vector<8x1xf32> -> vector<8x256xf32>
    %170 = arith.select %23, %166, %169 : vector<8x256xi1>, vector<8x256xf32>
    %171 = vector.extract_strided_slice %163 {offsets = [0, 15], sizes = [8, 241], strides = [1, 1]} : vector<8x256xf32> to vector<8x241xf32>
    %172 = vector.extract_strided_slice %163 {offsets = [0, 0], sizes = [8, 15], strides = [1, 1]} : vector<8x256xf32> to vector<8x15xf32>
    %173 = tpu.concatenate %171, %172 in 1 : vector<8x241xf32>, vector<8x15xf32> -> vector<8x256xf32>
    %174 = vector.extract_strided_slice %163 {offsets = [0, 255], sizes = [8, 1], strides = [1, 1]} : vector<8x256xf32> to vector<8x1xf32>
    %175 = vector.extract_strided_slice %163 {offsets = [0, 0], sizes = [8, 255], strides = [1, 1]} : vector<8x256xf32> to vector<8x255xf32>
    %176 = tpu.concatenate %174, %175 in 1 : vector<8x1xf32>, vector<8x255xf32> -> vector<8x256xf32>
    %177 = arith.select %21, %173, %176 : vector<8x256xi1>, vector<8x256xf32>
    %178 = vector.extract_strided_slice %177 {offsets = [0, 240], sizes = [8, 16], strides = [1, 1]} : vector<8x256xf32> to vector<8x16xf32>
    %179 = vector.extract_strided_slice %177 {offsets = [0, 0], sizes = [8, 240], strides = [1, 1]} : vector<8x256xf32> to vector<8x240xf32>
    %180 = tpu.concatenate %178, %179 in 1 : vector<8x16xf32>, vector<8x240xf32> -> vector<8x256xf32>
    %181 = vector.extract_strided_slice %163 {offsets = [0, 240], sizes = [8, 16], strides = [1, 1]} : vector<8x256xf32> to vector<8x16xf32>
    %182 = vector.extract_strided_slice %163 {offsets = [0, 0], sizes = [8, 240], strides = [1, 1]} : vector<8x256xf32> to vector<8x240xf32>
    %183 = tpu.concatenate %181, %182 in 1 : vector<8x16xf32>, vector<8x240xf32> -> vector<8x256xf32>
    %184 = vector.extract_strided_slice %170 {offsets = [0, 240], sizes = [8, 16], strides = [1, 1]} : vector<8x256xf32> to vector<8x16xf32>
    %185 = vector.extract_strided_slice %170 {offsets = [0, 0], sizes = [8, 240], strides = [1, 1]} : vector<8x256xf32> to vector<8x240xf32>
    %186 = tpu.concatenate %184, %185 in 1 : vector<8x16xf32>, vector<8x240xf32> -> vector<8x256xf32>
    %187 = vector.extract_strided_slice %177 {offsets = [0, 16], sizes = [8, 240], strides = [1, 1]} : vector<8x256xf32> to vector<8x240xf32>
    %188 = vector.extract_strided_slice %177 {offsets = [0, 0], sizes = [8, 16], strides = [1, 1]} : vector<8x256xf32> to vector<8x16xf32>
    %189 = tpu.concatenate %187, %188 in 1 : vector<8x240xf32>, vector<8x16xf32> -> vector<8x256xf32>
    %190 = vector.extract_strided_slice %163 {offsets = [0, 16], sizes = [8, 240], strides = [1, 1]} : vector<8x256xf32> to vector<8x240xf32>
    %191 = vector.extract_strided_slice %163 {offsets = [0, 0], sizes = [8, 16], strides = [1, 1]} : vector<8x256xf32> to vector<8x16xf32>
    %192 = tpu.concatenate %190, %191 in 1 : vector<8x240xf32>, vector<8x16xf32> -> vector<8x256xf32>
    %193 = vector.extract_strided_slice %170 {offsets = [0, 16], sizes = [8, 240], strides = [1, 1]} : vector<8x256xf32> to vector<8x240xf32>
    %194 = vector.extract_strided_slice %170 {offsets = [0, 0], sizes = [8, 16], strides = [1, 1]} : vector<8x256xf32> to vector<8x16xf32>
    %195 = tpu.concatenate %193, %194 in 1 : vector<8x240xf32>, vector<8x16xf32> -> vector<8x256xf32>
    %196 = tpu.concatenate %180, %183, %186, %177, %163, %170, %189, %192, %195 in 0 : vector<8x256xf32>, vector<8x256xf32>, vector<8x256xf32>, vector<8x256xf32>, vector<8x256xf32>, vector<8x256xf32>, vector<8x256xf32>, vector<8x256xf32>, vector<8x256xf32> -> vector<72x256xf32>
    %197 = arith.truncf %196 : vector<72x256xf32> to vector<72x256xbf16>
    %cst_27 = arith.constant dense<0.000000e+00> : vector<32x256xf32>
    %198 = tpu.matmul %0, %197, %cst_27 {dimension_numbers = #tpu.dot_dimension_numbers<[1], [0], [0], [1], [0, 0, 1, 1], [], []>} : vector<32x72xbf16>, vector<72x256xbf16>, vector<32x256xf32> -> vector<32x256xf32>
    %199 = vector.broadcast %2 : vector<32x1xf32> to vector<32x256xf32>
    %200 = arith.addf %198, %199 : vector<32x256xf32>
    %cst_28 = arith.constant 0.000000e+00 : f32
    %201 = vector.broadcast %cst_28 : f32 to vector<32x256xf32>
    %202 = arith.maximumf %200, %201 : vector<32x256xf32>
    %203 = arith.truncf %202 : vector<32x256xf32> to vector<32x256xbf16>
    %cst_29 = arith.constant dense<0.000000e+00> : vector<8x256xf32>
    %204 = tpu.matmul %1, %203, %cst_29 {dimension_numbers = #tpu.dot_dimension_numbers<[1], [0], [0], [1], [0, 0, 1, 1], [], []>} : vector<8x32xbf16>, vector<32x256xbf16>, vector<8x256xf32> -> vector<8x256xf32>
    %c0_30 = arith.constant 0 : index
    %c3 = arith.constant 3 : index
    %c0_31 = arith.constant 0 : index
    %205 = vector.load %arg2[%c0_30, %c3, %c0_31] : memref<1x4x256xf32, #tpu.memory_space<vmem>>, vector<1x1x256xf32>
    %206 = vector.shape_cast %205 : vector<1x1x256xf32> to vector<1x256xf32>
    %207 = vector.broadcast %206 : vector<1x256xf32> to vector<8x256xf32>
    %208 = arith.mulf %204, %207 : vector<8x256xf32>
    %209 = arith.addf %163, %208 : vector<8x256xf32>
    %c0_32 = arith.constant 0 : index
    %c0_33 = arith.constant 0 : index
    %c0_34 = arith.constant 0 : index
    %210 = vector.load %arg6[%c0_32, %c0_33, %c0_34] : memref<1x8x256xf32, #tpu.memory_space<vmem>>, vector<1x8x256xf32>
    %211 = vector.shape_cast %210 : vector<1x8x256xf32> to vector<8x256xf32>
    %212 = vector.shape_cast %209 : vector<8x256xf32> to vector<1x8x256xf32>
    tpu.vector_store %arg6[%c0_32, %c0_33, %c0_34], %212 {strides = array<i32>} : memref<1x8x256xf32, #tpu.memory_space<vmem>>, vector<1x8x256xf32>,
    return
  }
  func.func @transform_0(%arg0: i32) -> (i32, i32, i32) {
    %c0_i32 = arith.constant 0 : i32
    %c0_i32_0 = arith.constant 0 : i32
    %c0_i32_1 = arith.constant 0 : i32
    return %arg0, %c0_i32, %c0_i32_0 : i32, i32, i32
  }
  func.func @transform_1(%arg0: i32) -> (i32, i32, i32) {
    %c0_i32 = arith.constant 0 : i32
    %c0_i32_0 = arith.constant 0 : i32
    %c0_i32_1 = arith.constant 0 : i32
    return %arg0, %c0_i32, %c0_i32_0 : i32, i32, i32
  }
  func.func @transform_2(%arg0: i32) -> (i32, i32) {
    %c0_i32 = arith.constant 0 : i32
    %c0_i32_0 = arith.constant 0 : i32
    %c0_i32_1 = arith.constant 0 : i32
    return %c0_i32, %c0_i32_0 : i32, i32
  }
  func.func @transform_3(%arg0: i32) -> (i32, i32) {
    %c0_i32 = arith.constant 0 : i32
    %c0_i32_0 = arith.constant 0 : i32
    %c0_i32_1 = arith.constant 0 : i32
    return %c0_i32, %c0_i32_0 : i32, i32
  }
  func.func @transform_4(%arg0: i32) -> (i32, i32) {
    %c0_i32 = arith.constant 0 : i32
    %c0_i32_0 = arith.constant 0 : i32
    %c0_i32_1 = arith.constant 0 : i32
    return %c0_i32, %c0_i32_0 : i32, i32
  }
  func.func @transform_5(%arg0: i32) -> (i32, i32, i32) {
    %c0_i32 = arith.constant 0 : i32
    %c0_i32_0 = arith.constant 0 : i32
    %c0_i32_1 = arith.constant 0 : i32
    return %arg0, %c0_i32, %c0_i32_0 : i32, i32, i32
  }
}

</mosaic_0001>

<llo_original>
// kernel: tpu_custom_call.1
$region0: #{tpu_custom_call.1}
  #allocation0 [shape = 'u32[]', space=smem, size = 0x4, offset = 0x4, fixed_abs, tag = 'smem constant byte address 0x4 - core index']
  #allocation1 [shape = 'u32[144,128]{1,0:T(1,128)}', space=vmem, size = 0x12000, scoped, tag = 'internal scratch']
  %s0 = inlined_call_operand.vmem [shape: f32[2,8,256], index: 0, kind: input, shape index: {}]
  %s1 = inlined_call_operand.hbm [shape: f32[2,4,256], index: 1, kind: input, shape index: {}]
  %s2 = inlined_call_operand.hbm [shape: bf16[32,72], index: 2, kind: input, shape index: {}]
  %s3 = inlined_call_operand.vmem [shape: f32[32,1], index: 3, kind: input, shape index: {}]
  %s4 = inlined_call_operand.vmem [shape: bf16[8,32], index: 4, kind: input, shape index: {}]
  %s5 = inlined_call_operand.hbm [shape: f32[2,8,256], index: 5, kind: output, shape index: {}]
  %s6 = sld [smem:[#allocation0]]
  $region61: #{tpu_custom_call.1} parent=0
    _
  %s8 = ssub.s32 1, %s6
  %s9 = scalar_select 0, %s8, %s6
  $region1: #{tpu_custom_call.1} parent=0
    #allocation2 [shape = 'u8[8192]{0}', space=vmem, size = 0x2000, scoped, tag = 'input window, operand 1']
    #allocation3 [shape = 's32[2]{0}', space=sflag, size = 0x8, scoped, tag = 'scoped memory for tpu_custom_call.1']
    #allocation4 [shape = 's32[2]{0}', space=sflag, size = 0x8, scoped, tag = 'scoped memory for tpu_custom_call.1']
    #allocation5 [shape = 'u8[8192]{0}', space=vmem, size = 0x2000, scoped, tag = 'input window, operand 2, single buffered']
    #allocation6 [shape = 's32[1]{0}', space=sflag, size = 0x4, scoped, tag = 'scoped memory for tpu_custom_call.1']
    #allocation7 [shape = 'u8[16384]{0}', space=vmem, size = 0x4000, scoped, tag = 'output window, operand 0']
    %10 = vsyncpa [#allocation3], 0
    %s11 = scalar_lea.sflag [#allocation3], 1
    %12 = vsyncpa %s11, 0
    %13 = vsyncpa [#allocation6], 0
    %14 = vsyncpa [#allocation4], 0
    %s15 = scalar_lea.sflag [#allocation4], 1
    %16 = vsyncpa %s15, 0
    loop: start=0, step=1, limit=4
    $region2: #{tpu_custom_call.1} parent=1 // loop_pre_header
      _
    $region3: #{tpu_custom_call.1} parent=1 // loop_header
      %s18 = sphi 0, %s22
      %p19 = scmp.ge.s32.totalorder %s18, 4
      %s28 = sphi 0, %s30
      %s31 = sphi 0, %s28
      %s32 = sphi 0, %s31
      %s48 = sphi 0, %s32
      %s54 = sphi 0, %s56
      %s57 = sphi 0, %s54
      %s58 = sphi 0, %s57
      %s74 = sphi 0, %s58
      %s78 = sphi 0, %s78
      %s80 = sphi 0, %s78
      %s81 = sphi 0, %s80
      %s95 = sphi 0, %s81
      %s99 = sphi 0, %s99
      %s101 = sphi 0, %s99
      %s102 = sphi 0, %s101
      %s116 = sphi 0, %s102
      %s120 = sphi 0, %s120
      %s122 = sphi 0, %s120
      %s123 = sphi 0, %s122
      %s137 = sphi 0, %s123
      %s143 = sphi 0, %s145
      %s146 = sphi 0, %s143
      %s147 = sphi 0, %s146
      %s163 = sphi 0, %s147
    $region4: #{tpu_custom_call.1} parent=1 // loop_header_branch
      %21 = sbr.rel (%p19) target = $region8
    $region5: #{tpu_custom_call.1} parent=1 // loop_body
      %s23 = ssub.s32 %s18, 1
      %s24 = ssub.s32 %s18, 2
      %s25 = sadd.s32 %s18, 1
      %s26 = ssub.s32 %s18, %s25
      %p27 = scmp.eq.s32.totalorder %s26, 0
      %s29 = sadd.s32 %s28, 1
      %s30 = scalar_select %p27, %s28, %s29
      %p33 = pneg %p27
      %p34 = scmp.eq.s32.totalorder %s18, 1
      %p35 = por %p33, %p34
      %p36 = scmp.ne.s32.totalorder %s28, %s31
      %p37 = scmp.eq.s32.totalorder %s18, 0
      %p38 = por %p36, %p37
      %p39 = scmp.ne.s32.totalorder %s28, %s31
      %p40 = scmp.eq.s32.totalorder %s23, 1
      %p41 = por %p39, %p40
      %p42 = scmp.ne.s32.totalorder %s31, %s32
      %p43 = scmp.eq.s32.totalorder %s23, 0
      %p44 = por %p42, %p43
      %p45 = scmp.ne.s32.totalorder %s31, %s32
      %p46 = scmp.eq.s32.totalorder %s24, 1
      %p47 = por %p45, %p46
      %p49 = scmp.ne.s32.totalorder %s32, %s48
      %p50 = scmp.eq.s32.totalorder %s24, 0
      %p51 = por %p49, %p50
      %s52 = ssub.s32 %s18, %s25
      %p53 = scmp.eq.s32.totalorder %s52, 0
      %s55 = sadd.s32 %s54, 1
      %s56 = scalar_select %p53, %s54, %s55
      %p59 = pneg %p53
      %p60 = scmp.eq.s32.totalorder %s18, 1
      %p61 = por %p59, %p60
      %p62 = scmp.ne.s32.totalorder %s54, %s57
      %p63 = scmp.eq.s32.totalorder %s18, 0
      %p64 = por %p62, %p63
      %p65 = scmp.ne.s32.totalorder %s54, %s57
      %p66 = scmp.eq.s32.totalorder %s23, 1
      %p67 = por %p65, %p66
      %p68 = scmp.ne.s32.totalorder %s57, %s58
      %p69 = scmp.eq.s32.totalorder %s23, 0
      %p70 = por %p68, %p69
      %p71 = scmp.ne.s32.totalorder %s57, %s58
      %p72 = scmp.eq.s32.totalorder %s24, 1
      %p73 = por %p71, %p72
      %p75 = scmp.ne.s32.totalorder %s58, %s74
      %p76 = scmp.eq.s32.totalorder %s24, 0
      %p77 = por %p75, %p76
      %s79 = sadd.s32 %s78, 1
      %p82 = scmp.eq.s32.totalorder %s18, 1
      %p83 = scmp.ne.s32.totalorder %s78, %s80
      %p84 = scmp.eq.s32.totalorder %s18, 0
      %p85 = por %p83, %p84
      %p86 = scmp.ne.s32.totalorder %s78, %s80
      %p87 = scmp.eq.s32.totalorder %s23, 1
      %p88 = por %p86, %p87
      %p89 = scmp.ne.s32.totalorder %s80, %s81
      %p90 = scmp.eq.s32.totalorder %s23, 0
      %p91 = por %p89, %p90
      %p92 = scmp.ne.s32.totalorder %s80, %s81
      %p93 = scmp.eq.s32.totalorder %s24, 1
      %p94 = por %p92, %p93
      %p96 = scmp.ne.s32.totalorder %s81, %s95
      %p97 = scmp.eq.s32.totalorder %s24, 0
      %p98 = por %p96, %p97
      %s100 = sadd.s32 %s99, 1
      %p103 = scmp.eq.s32.totalorder %s18, 1
      %p104 = scmp.ne.s32.totalorder %s99, %s101
      %p105 = scmp.eq.s32.totalorder %s18, 0
      %p106 = por %p104, %p105
      %p107 = scmp.ne.s32.totalorder %s99, %s101
      %p108 = scmp.eq.s32.totalorder %s23, 1
      %p109 = por %p107, %p108
      %p110 = scmp.ne.s32.totalorder %s101, %s102
      %p111 = scmp.eq.s32.totalorder %s23, 0
      %p112 = por %p110, %p111
      %p113 = scmp.ne.s32.totalorder %s101, %s102
      %p114 = scmp.eq.s32.totalorder %s24, 1
      %p115 = por %p113, %p114
      %p117 = scmp.ne.s32.totalorder %s102, %s116
      %p118 = scmp.eq.s32.totalorder %s24, 0
      %p119 = por %p117, %p118
      %s121 = sadd.s32 %s120, 1
      %p124 = scmp.eq.s32.totalorder %s18, 1
      %p125 = scmp.ne.s32.totalorder %s120, %s122
      %p126 = scmp.eq.s32.totalorder %s18, 0
      %p127 = por %p125, %p126
      %p128 = scmp.ne.s32.totalorder %s120, %s122
      %p129 = scmp.eq.s32.totalorder %s23, 1
      %p130 = por %p128, %p129
      %p131 = scmp.ne.s32.totalorder %s122, %s123
      %p132 = scmp.eq.s32.totalorder %s23, 0
      %p133 = por %p131, %p132
      %p134 = scmp.ne.s32.totalorder %s122, %s123
      %p135 = scmp.eq.s32.totalorder %s24, 1
      %p136 = por %p134, %p135
      %p138 = scmp.ne.s32.totalorder %s123, %s137
      %p139 = scmp.eq.s32.totalorder %s24, 0
      %p140 = por %p138, %p139
      %s141 = ssub.s32 %s18, %s25
      %p142 = scmp.eq.s32.totalorder %s141, 0
      %s144 = sadd.s32 %s143, 1
      %s145 = scalar_select %p142, %s143, %s144
      %p148 = pneg %p142
      %p149 = scmp.eq.s32.totalorder %s18, 1
      %p150 = por %p148, %p149
      %p151 = scmp.ne.s32.totalorder %s143, %s146
      %p152 = scmp.eq.s32.totalorder %s18, 0
      %p153 = por %p151, %p152
      %p154 = scmp.ne.s32.totalorder %s143, %s146
      %p155 = scmp.eq.s32.totalorder %s23, 1
      %p156 = por %p154, %p155
      %p157 = scmp.ne.s32.totalorder %s146, %s147
      %p158 = scmp.eq.s32.totalorder %s23, 0
      %p159 = por %p157, %p158
      %p160 = scmp.ne.s32.totalorder %s146, %s147
      %p161 = scmp.eq.s32.totalorder %s24, 1
      %p162 = por %p160, %p161
      %p164 = scmp.ne.s32.totalorder %s147, %s163
      %p165 = scmp.eq.s32.totalorder %s24, 0
      %p166 = por %p164, %p165
      %p167 = scmp.le.s32.totalorder 1, %s18
      %p168 = scmp.lt.s32.totalorder %s18, 3
      %p169 = pnand %p167, %p168
      %p170 = pneg %p169
      // Predicated region
      $region9: #{tpu_custom_call.1} parent=5 // pred_check
        _
      $region10: #{tpu_custom_call.1} parent=5 // pred_check_branch
        %172 = sbr.rel (%p169) target = $region12
      $region11: #{tpu_custom_call.1} parent=5 // pred_region
        %s173 = ssub.s32 %s18, 1
        // Predicated region
        $region13: #{tpu_custom_call.1} parent=11 // pred_check
          %p174 = pneg %p91
        $region14: #{tpu_custom_call.1} parent=11 // pred_check_branch
          %176 = sbr.rel (%p174) target = $region16
        $region15: #{tpu_custom_call.1} parent=11 // pred_region
          %s178 = ssub.s32 256, 256
          %179 = vsyncadd [#allocation6], %s178
          %s180 = sshll.u32 [#allocation5], 4
          %s181 = int_to_ptr.vmem [resolvable:$true] %s180
          %186 = dma.hbm_to_vmem [thread:$0]  %s2, 256, %s181, [#allocation6], 64, 64, 4
        $region16: #{tpu_custom_call.1} parent=11 // pred_fallthru
          _
        // Predicated region
        $region17: #{tpu_custom_call.1} parent=11 // pred_check
          %p187 = pneg %p112
        $region18: #{tpu_custom_call.1} parent=11 // pred_check_branch
          %189 = sbr.rel (%p187) target = $region20
        $region19: #{tpu_custom_call.1} parent=11 // pred_region
          _
        $region20: #{tpu_custom_call.1} parent=11 // pred_fallthru
          _
        // Predicated region
        $region21: #{tpu_custom_call.1} parent=11 // pred_check
          %p190 = pneg %p133
        $region22: #{tpu_custom_call.1} parent=11 // pred_check_branch
          %192 = sbr.rel (%p190) target = $region24
        $region23: #{tpu_custom_call.1} parent=11 // pred_region
          _
        $region24: #{tpu_custom_call.1} parent=11 // pred_fallthru
          _
      $region12: #{tpu_custom_call.1} parent=5 // pred_fallthru
        _
      %p193 = scmp.lt.s32.totalorder %s18, 2
      // Predicated region
      $region25: #{tpu_custom_call.1} parent=5 // pred_check
        %p194 = pneg %p193
      $region26: #{tpu_custom_call.1} parent=5 // pred_check_branch
        %196 = sbr.rel (%p194) target = $region28
      $region27: #{tpu_custom_call.1} parent=5 // pred_region
        // Predicated region
        $region29: #{tpu_custom_call.1} parent=27 // pred_check
          %p197 = pneg %p38
        $region30: #{tpu_custom_call.1} parent=27 // pred_check_branch
          %199 = sbr.rel (%p197) target = $region32
        $region31: #{tpu_custom_call.1} parent=27 // pred_region
          %p200 = scmp.lt.s32.totalorder %s18, 1
          %s201 = scalar_select %p200, %s18, 1
          %s202 = smul.addr %s201, 2
          %s203 = smul.addr %s202, 8
          %s204 = scalar_lea.vmem %s0, %s203
        $region32: #{tpu_custom_call.1} parent=27 // pred_fallthru
          _
        // Predicated region
        $region33: #{tpu_custom_call.1} parent=27 // pred_check
          %p205 = pneg %p64
        $region34: #{tpu_custom_call.1} parent=27 // pred_check_branch
          %207 = sbr.rel (%p205) target = $region36
        $region35: #{tpu_custom_call.1} parent=27 // pred_region
          %s208 = sand.u32 %s54, 1
          %s209 = scalar_lea.sflag [#allocation3], %s208
          %s210 = sand.u32 %s54, 1
          %s211 = smul.addr %s210, 8
          %s212 = scalar_lea.vmem [#allocation2], %s211
          %s214 = ssub.s32 128, 128
          %215 = vsyncadd %s209, %s214
          %s216 = smul.addr %s18, 2
          %s217 = smul.addr %s216, 64
          %s218 = scalar_lea.hbm %s1, %s217
          %s220 = sshll.u32 %s212, 4
          %s221 = int_to_ptr.vmem [resolvable:$true] %s220
          %223 = dma.hbm_to_vmem [thread:$0]  %s218, 128, %s221, %s209
        $region36: #{tpu_custom_call.1} parent=27 // pred_fallthru
          _
      $region28: #{tpu_custom_call.1} parent=5 // pred_fallthru
        _
      %p224 = scmp.le.s32.totalorder 1, %s18
      %p225 = scmp.lt.s32.totalorder %s18, 3
      %p226 = pnand %p224, %p225
      %p227 = pneg %p226
      // Predicated region
      $region37: #{tpu_custom_call.1} parent=5 // pred_check
        _
      $region38: #{tpu_custom_call.1} parent=5 // pred_check_branch
        %229 = sbr.rel (%p226) target = $region40
      $region39: #{tpu_custom_call.1} parent=5 // pred_region
        %s230 = ssub.s32 %s18, 1
        %s231 = sand.u32 %s57, 1
        %s232 = scalar_lea.sflag [#allocation3], %s231
        %s233 = sand.u32 %s57, 1
        %s234 = smul.addr %s233, 8
        %s235 = scalar_lea.vmem [#allocation2], %s234
        // Predicated region
        $region41: #{tpu_custom_call.1} parent=39 // pred_check
          %p236 = pneg %p70
        $region42: #{tpu_custom_call.1} parent=39 // pred_check_branch
          %238 = sbr.rel (%p236) target = $region44
        $region43: #{tpu_custom_call.1} parent=39 // pred_region
          %239 = dma.done %s232, 128
        $region44: #{tpu_custom_call.1} parent=39 // pred_fallthru
          _
        // Predicated region
        $region45: #{tpu_custom_call.1} parent=39 // pred_check
          %p240 = pneg %p91
        $region46: #{tpu_custom_call.1} parent=39 // pred_check_branch
          %242 = sbr.rel (%p240) target = $region48
        $region47: #{tpu_custom_call.1} parent=39 // pred_region
          %243 = dma.done [#allocation6], 256
        $region48: #{tpu_custom_call.1} parent=39 // pred_fallthru
          _
        %p244 = scmp.lt.s32.totalorder %s23, 1
        %s245 = scalar_select %p244, %s23, 1
        %s246 = smul.addr %s245, 2
        %s247 = smul.addr %s246, 8
        %s248 = scalar_lea.vmem %s0, %s247
        %p249 = pneg %p44
        %p250 = pneg %p41
        %s251 = sand.u32 %s57, 1
        %s252 = scalar_lea.sflag [#allocation3], %s251
        %s253 = sand.u32 %s57, 1
        %s254 = smul.addr %s253, 8
        %s255 = scalar_lea.vmem [#allocation2], %s254
        %p256 = pneg %p70
        %p257 = pneg %p67
        %p258 = pneg %p91
        %p259 = pneg %p88
        %p260 = pneg %p112
        %p261 = pneg %p109
        %p262 = pneg %p133
        %p263 = pneg %p130
        %p264 = pneg %p159
        %p265 = pneg %p156
        %s266 = sand.u32 %s146, 1
        %s267 = scalar_lea.sflag [#allocation4], %s266
        %s268 = sand.u32 %s146, 1
        %s269 = smul.addr %s268, 16
        %s270 = scalar_lea.vmem [#allocation7], %s269
        %p271 = scmp.lt.s32.totalorder %s23, 1
        %s272 = scalar_select %p271, %s23, 1
        %s273 = smul.addr %s272, 2
        %s274 = smul.addr %s273, 8
        %s275 = scalar_lea.vmem %s0, %s274
        %v277 = vld [vmem:[#allocation5] sm:$0xf]
        %v278 = vld [vmem:[#allocation5 + $0x4] sm:$0xf]
        %v279 = vld [vmem:[#allocation5 + $0x8] sm:$0xf]
        %v280 = vld [vmem:[#allocation5 + $0xc] sm:$0xf]
        %v281 = vld [vmem:[%s4] sm:$0xf]
        %v282 = vld [vmem:[%s3] sm:$0xff]
        %v283 = vld [vmem:[%s3 + $0x8] sm:$0xff]
        %v284 = vld [vmem:[%s3 + $0x10] sm:$0xff]
        %v285 = vld [vmem:[%s3 + $0x18] sm:$0xff]
        %v286 = vlaneseq
        %v287 = vand.u32 %v286, 127
        %v288 = vadd.s32 %v287, 128
        %vm289 = vcmp.lt.s32.totalorder %v287, 0
        %v290 = vsub.s32 0, %v287
        %v291 = vsel %vm289, %v290, %v287
        %v292 = vshrl.u32 %v291, 4
        %v293 = vand.u32 %v291, 15
        %v294 = vsub.s32 0, %v293
        %v295 = vsel %vm289, %v294, %v293
        %vm296 = vcmp.lt.s32.totalorder %v288, 0
        %v297 = vsub.s32 0, %v288
        %v298 = vsel %vm296, %v297, %v288
        %v299 = vshrl.u32 %v298, 4
        %v300 = vand.u32 %v298, 15
        %v301 = vsub.s32 0, %v300
        %v302 = vsel %vm296, %v301, %v300
        %vm303 = vcmp.ne.s32.totalorder %v295, 0
        %vm304 = vcmp.ne.s32.totalorder %v302, 0
        %vm305 = vcmp.lt.s32.totalorder %v295, 0
        %vm306 = vcmp.lt.s32.totalorder %v302, 0
        %vm307 = vmand %vm305, %vm303
        %vm308 = vmand %vm306, %vm304
        %v309 = vadd.s32 %v295, 16
        %v310 = vadd.s32 %v302, 16
        %v311 = vsel %vm307, %v309, %v295
        %v312 = vsel %vm308, %v310, %v302
        %vm313 = vcmp.eq.s32.totalorder %v311, 0
        %vm314 = vcmp.eq.s32.totalorder %v312, 0
        %vm315 = vcmp.eq.s32.totalorder %v311, 15
        %vm316 = vcmp.eq.s32.totalorder %v312, 15
        %v317 = vld [vmem:[%s275] sm:$0xff]
        %v318 = vld [vmem:[%s275 + $0x8] sm:$0xff]
        %320 = vrot.lane.b32.xlu0 %v318, 15
        %v321 = vpop.permute.xlu0 %320
        %324 = vrot.lane.b32.xlu0 %v317, 15
        %v325 = vpop.permute.xlu0 %324
        %vm326 = vcmask 121856
        %v327 = vsel %vm326, %v325, %v321
        %v330 = vsel %vm326, %v321, %v325
        %331 = vrot.lane.b32.xlu0 %v317, 127
        %v332 = vpop.permute.xlu0 %331
        %333 = vrot.lane.b32.xlu0 %v318, 127
        %v334 = vpop.permute.xlu0 %333
        %vm335 = vcmask 1039360
        %v336 = vsel %vm335, %v332, %v334
        %v340 = vsel %vm335, %v334, %v332
        %v341 = vsel %vm315, %v330, %v336
        %v342 = vsel %vm316, %v327, %v340
        %343 = vrot.lane.b32.xlu0 %v317, 113
        %v344 = vpop.permute.xlu0 %343
        %345 = vrot.lane.b32.xlu0 %v318, 113
        %v346 = vpop.permute.xlu0 %345
        %vm347 = vcmask 924672
        %v348 = vsel %vm347, %v344, %v346
        %v352 = vsel %vm347, %v346, %v344
        %353 = vrot.lane.b32.xlu0 %v318, 1
        %v354 = vpop.permute.xlu0 %353
        %356 = vrot.lane.b32.xlu0 %v317, 1
        %v357 = vpop.permute.xlu0 %356
        %vm358 = vcmask 7168
        %v359 = vsel %vm358, %v357, %v354
        %v362 = vsel %vm358, %v354, %v357
        %v363 = vsel %vm313, %v348, %v362
        %v364 = vsel %vm314, %v352, %v359
        %366 = vrot.lane.b32.xlu0 %v364, 16
        %v367 = vpop.permute.xlu0 %366
        %370 = vrot.lane.b32.xlu0 %v363, 16
        %v371 = vpop.permute.xlu0 %370
        %vm372 = vcmask 130048
        %v373 = vsel %vm372, %v371, %v367
        %v376 = vsel %vm372, %v367, %v371
        %377 = vrot.lane.b32.xlu0 %v318, 16
        %v378 = vpop.permute.xlu0 %377
        %380 = vrot.lane.b32.xlu0 %v317, 16
        %v381 = vpop.permute.xlu0 %380
        %v382 = vsel %vm372, %v381, %v378
        %v385 = vsel %vm372, %v378, %v381
        %387 = vrot.lane.b32.xlu0 %v342, 16
        %v388 = vpop.permute.xlu0 %387
        %391 = vrot.lane.b32.xlu0 %v341, 16
        %v392 = vpop.permute.xlu0 %391
        %v393 = vsel %vm372, %v392, %v388
        %v396 = vsel %vm372, %v388, %v392
        %397 = vrot.lane.b32.xlu0 %v363, 112
        %v398 = vpop.permute.xlu0 %397
        %399 = vrot.lane.b32.xlu0 %v364, 112
        %v400 = vpop.permute.xlu0 %399
        %vm401 = vcmask 916480
        %v402 = vsel %vm401, %v398, %v400
        %v406 = vsel %vm401, %v400, %v398
        %407 = vrot.lane.b32.xlu0 %v317, 112
        %v408 = vpop.permute.xlu0 %407
        %409 = vrot.lane.b32.xlu0 %v318, 112
        %v410 = vpop.permute.xlu0 %409
        %v411 = vsel %vm401, %v408, %v410
        %v415 = vsel %vm401, %v410, %v408
        %416 = vrot.lane.b32.xlu0 %v341, 112
        %v417 = vpop.permute.xlu0 %416
        %418 = vrot.lane.b32.xlu0 %v342, 112
        %v419 = vpop.permute.xlu0 %418
        %v420 = vsel %vm401, %v417, %v419
        %v424 = vsel %vm401, %v419, %v417
        %v425 = vpack.c.bf16 %v385, %v376
        %v426 = vpack.c.bf16 %v382, %v373
        %v427 = vpack.c.bf16 %v363, %v396
        %v428 = vpack.c.bf16 %v364, %v393
        %v429 = vpack.c.bf16 %v341, %v317
        %v430 = vpack.c.bf16 %v342, %v318
        %v431 = vpack.c.bf16 %v411, %v402
        %v432 = vpack.c.bf16 %v415, %v406
        %v433 = vpack.c.bf16 %v420, %v420
        %v434 = vpack.c.bf16 %v424, %v424
        %436 = vset.pattern.permute.xlu0 0
        %437 = vperm.xlu0 %436, %v282
        %v438 = vpop.permute.xlu0 %437
        %441 = vset.pattern.permute.xlu0 0
        %442 = vperm.xlu0 %441, %v283
        %v443 = vpop.permute.xlu0 %442
        %446 = vset.pattern.permute.xlu0 0
        %447 = vperm.xlu0 %446, %v284
        %v448 = vpop.permute.xlu0 %447
        %451 = vset.pattern.permute.xlu0 0
        %452 = vperm.xlu0 %451, %v285
        %v453 = vpop.permute.xlu0 %452
        %v459 = vunpack.c.l.b16 %v277
        %v460 = vunpack.c.l.b16 %v278
        %v461 = vunpack.c.l.b16 %v279
        %v462 = vunpack.c.l.b16 %v280
        %v463 = vpack.c.b16 %v460, %v459
        %v464 = vpack.c.b16 %v462, %v461
        %vm465 = vcmask 588800
        %v467 = vsel %vm465, %v463, 0
        %v470 = vsel %vm465, %v464, 0
        %vm472 = vcmask 1043456
        %v474 = vsel %vm472, %v433, 0
        %v477 = vsel %vm472, %v434, 0
        %479 = vmatprep.subr.bf16.mxu0 %v426
        %480 = vmatpush1.bf16.msra.mxu0 %v425
        %481 = vmatprep.subr.bf16.mxu0 %v428
        %482 = vmatpush1.bf16.msra.mxu0 %v427
        %483 = vmatprep.subr.bf16.mxu0 %v430
        %484 = vmatpush1.bf16.msra.mxu0 %v429
        %485 = vmatprep.subr.bf16.mxu0 %v432
        %486 = vmatpush1.bf16.msra.mxu0 %v431
        %487 = vmatprep.subr.bf16.mxu0 %v477
        %488 = vmatpush1.bf16.msra.mxu0 %v474
        %489 = vmatprep.subr.bf16.mxu0 0
        %490 = vmatpush1.bf16.msra.mxu0 0
        %491 = vmatprep.subr.bf16.mxu0 0
        %492 = vmatpush1.bf16.msra.mxu0 0
        %493 = vmatprep.subr.bf16.mxu0 0
        %494 = vmatpush1.bf16.msra.mxu0 0
        %495 = vmatprep.subr.bf16.mxu0 0
        %496 = vmatpush1.bf16.msra.mxu0 0
        %497 = vmatprep.subr.bf16.mxu0 0
        %498 = vmatpush1.bf16.msra.mxu0 0
        %499 = vmatprep.subr.bf16.mxu0 0
        %500 = vmatpush1.bf16.msra.mxu0 0
        %501 = vmatprep.subr.bf16.mxu0 0
        %502 = vmatpush1.bf16.msra.mxu0 0
        %503 = vmatprep.subr.bf16.mxu0 0
        %504 = vmatpush1.bf16.msra.mxu0 0
        %505 = vmatprep.subr.bf16.mxu0 0
        %506 = vmatpush1.bf16.msra.mxu0 0
        %507 = vmatprep.subr.bf16.mxu0 0
        %508 = vmatpush1.bf16.msra.mxu0 0
        %509 = vmatprep.subr.bf16.mxu0 0
        %510 = vmatpush1.bf16.msra.mxu0 0
        %511 = vmatprep.mubr.bf16.mxu0 0
        %512 = vmatmul.mubr.bf16.gmra.mrb[0].mxu0 %v467
        %v513 = vpop.f32.mrb[0].mxu0
        %v514 = vadd.f32 %v438, %v513
        %v515 = vpop.f32.mrb[0].mxu0
        %v516 = vadd.f32 %v438, %v515
        %v517 = vpop.f32.mrb[0].mxu0
        %v518 = vadd.f32 %v443, %v517
        %v519 = vpop.f32.mrb[0].mxu0
        %v520 = vadd.f32 %v443, %v519
        %521 = vmatprep.mubr.bf16.mxu0 0
        %522 = vmatmul.mubr.bf16.gmra.mrb[0].mxu0 %v470
        %v523 = vpop.f32.mrb[0].mxu0
        %v524 = vadd.f32 %v448, %v523
        %v525 = vpop.f32.mrb[0].mxu0
        %v526 = vadd.f32 %v448, %v525
        %v527 = vpop.f32.mrb[0].mxu0
        %v528 = vadd.f32 %v453, %v527
        %v529 = vpop.f32.mrb[0].mxu0
        %v530 = vadd.f32 %v453, %v529
        %531 = vdwg.mxu0
        %v532 = vmax.f32 %v514, 0.0
        %v533 = vmax.f32 %v516, 0.0
        %v534 = vmax.f32 %v518, 0.0
        %v535 = vmax.f32 %v520, 0.0
        %v536 = vmax.f32 %v524, 0.0
        %v537 = vmax.f32 %v526, 0.0
        %v538 = vmax.f32 %v528, 0.0
        %v539 = vmax.f32 %v530, 0.0
        %v540 = vpack.c.bf16 %v534, %v532
        %v541 = vpack.c.bf16 %v535, %v533
        %v542 = vpack.c.bf16 %v538, %v536
        %v543 = vpack.c.bf16 %v539, %v537
        %vm544 = vcmask 261120
        %v546 = vsel %vm544, %v281, 0
        %548 = vmatprep.subr.bf16.mxu0 %v541
        %549 = vmatpush1.bf16.msra.mxu0 %v540
        %550 = vmatprep.subr.bf16.mxu0 %v543
        %551 = vmatpush1.bf16.msra.mxu0 %v542
        %552 = vmatprep.subr.bf16.mxu0 0
        %553 = vmatpush1.bf16.msra.mxu0 0
        %554 = vmatprep.subr.bf16.mxu0 0
        %555 = vmatpush1.bf16.msra.mxu0 0
        %556 = vmatprep.subr.bf16.mxu0 0
        %557 = vmatpush1.bf16.msra.mxu0 0
        %558 = vmatprep.subr.bf16.mxu0 0
        %559 = vmatpush1.bf16.msra.mxu0 0
        %560 = vmatprep.subr.bf16.mxu0 0
        %561 = vmatpush1.bf16.msra.mxu0 0
        %562 = vmatprep.subr.bf16.mxu0 0
        %563 = vmatpush1.bf16.msra.mxu0 0
        %564 = vmatprep.subr.bf16.mxu0 0
        %565 = vmatpush1.bf16.msra.mxu0 0
        %566 = vmatprep.subr.bf16.mxu0 0
        %567 = vmatpush1.bf16.msra.mxu0 0
        %568 = vmatprep.subr.bf16.mxu0 0
        %569 = vmatpush1.bf16.msra.mxu0 0
        %570 = vmatprep.subr.bf16.mxu0 0
        %571 = vmatpush1.bf16.msra.mxu0 0
        %572 = vmatprep.subr.bf16.mxu0 0
        %573 = vmatpush1.bf16.msra.mxu0 0
        %574 = vmatprep.subr.bf16.mxu0 0
        %575 = vmatpush1.bf16.msra.mxu0 0
        %576 = vmatprep.subr.bf16.mxu0 0
        %577 = vmatpush1.bf16.msra.mxu0 0
        %578 = vmatprep.subr.bf16.mxu0 0
        %579 = vmatpush1.bf16.msra.mxu0 0
        %580 = vmatprep.mubr.bf16.mxu0 0
        %581 = vmatmul.mubr.bf16.gmra.mrb[0].mxu0 %v546
        %v582 = vpop.f32.mrb[0].mxu0
        %v583 = vadd.f32 0.0, %v582
        %v584 = vpop.f32.mrb[0].mxu0
        %v585 = vadd.f32 0.0, %v584
        %v586 = vpop.f32.mrb[0].mxu0
        %v587 = vpop.f32.mrb[0].mxu0
        %588 = vdwg.mxu0
        %v589 = vld [vmem:[%s235] ss:$4 sm:$0x3]
        %v591 = vlaneseq
        %v592 = vshrl.u32 %v591, 7
        %v593 = vsub.s32 0, %v592
        %v594 = vrot.slane %v589, %v593
        %v595 = vlaneseq
        %v596 = vshrl.u32 %v595, 7
        %v597 = vsub.s32 1, %v596
        %v598 = vrot.slane %v589, %v597
        %v601 = vmul.f32 %v583, %v594
        %v602 = vmul.f32 %v585, %v598
        %v603 = vadd.f32 %v317, %v601
        %v604 = vadd.f32 %v318, %v602
        %606 = vrot.lane.b32.xlu0 %v604, 15
        %v607 = vpop.permute.xlu0 %606
        %610 = vrot.lane.b32.xlu0 %v603, 15
        %v611 = vpop.permute.xlu0 %610
        %v612 = vsel %vm326, %v611, %v607
        %v615 = vsel %vm326, %v607, %v611
        %616 = vrot.lane.b32.xlu0 %v603, 127
        %v617 = vpop.permute.xlu0 %616
        %618 = vrot.lane.b32.xlu0 %v604, 127
        %v619 = vpop.permute.xlu0 %618
        %v620 = vsel %vm335, %v617, %v619
        %v624 = vsel %vm335, %v619, %v617
        %v625 = vsel %vm315, %v615, %v620
        %v626 = vsel %vm316, %v612, %v624
        %627 = vrot.lane.b32.xlu0 %v603, 113
        %v628 = vpop.permute.xlu0 %627
        %629 = vrot.lane.b32.xlu0 %v604, 113
        %v630 = vpop.permute.xlu0 %629
        %v631 = vsel %vm347, %v628, %v630
        %v635 = vsel %vm347, %v630, %v628
        %636 = vrot.lane.b32.xlu0 %v604, 1
        %v637 = vpop.permute.xlu0 %636
        %639 = vrot.lane.b32.xlu0 %v603, 1
        %v640 = vpop.permute.xlu0 %639
        %v641 = vsel %vm358, %v640, %v637
        %v644 = vsel %vm358, %v637, %v640
        %v645 = vsel %vm313, %v631, %v644
        %v646 = vsel %vm314, %v635, %v641
        %648 = vrot.lane.b32.xlu0 %v646, 16
        %v649 = vpop.permute.xlu0 %648
        %652 = vrot.lane.b32.xlu0 %v645, 16
        %v653 = vpop.permute.xlu0 %652
        %v654 = vsel %vm372, %v653, %v649
        %v657 = vsel %vm372, %v649, %v653
        %658 = vrot.lane.b32.xlu0 %v604, 16
        %v659 = vpop.permute.xlu0 %658
        %661 = vrot.lane.b32.xlu0 %v603, 16
        %v662 = vpop.permute.xlu0 %661
        %v663 = vsel %vm372, %v662, %v659
        %v666 = vsel %vm372, %v659, %v662
        %668 = vrot.lane.b32.xlu0 %v626, 16
        %v669 = vpop.permute.xlu0 %668
        %672 = vrot.lane.b32.xlu0 %v625, 16
        %v673 = vpop.permute.xlu0 %672
        %v674 = vsel %vm372, %v673, %v669
        %v677 = vsel %vm372, %v669, %v673
        %678 = vrot.lane.b32.xlu0 %v645, 112
        %v679 = vpop.permute.xlu0 %678
        %680 = vrot.lane.b32.xlu0 %v646, 112
        %v681 = vpop.permute.xlu0 %680
        %v682 = vsel %vm401, %v679, %v681
        %v686 = vsel %vm401, %v681, %v679
        %687 = vrot.lane.b32.xlu0 %v603, 112
        %v688 = vpop.permute.xlu0 %687
        %689 = vrot.lane.b32.xlu0 %v604, 112
        %v690 = vpop.permute.xlu0 %689
        %v691 = vsel %vm401, %v688, %v690
        %v695 = vsel %vm401, %v690, %v688
        %696 = vrot.lane.b32.xlu0 %v625, 112
        %v697 = vpop.permute.xlu0 %696
        %698 = vrot.lane.b32.xlu0 %v626, 112
        %v699 = vpop.permute.xlu0 %698
        %v700 = vsel %vm401, %v697, %v699
        %v704 = vsel %vm401, %v699, %v697
        %v705 = vpack.c.bf16 %v666, %v657
        %v706 = vpack.c.bf16 %v663, %v654
        %v707 = vpack.c.bf16 %v645, %v677
        %v708 = vpack.c.bf16 %v646, %v674
        %v709 = vpack.c.bf16 %v625, %v603
        %v710 = vpack.c.bf16 %v626, %v604
        %v711 = vpack.c.bf16 %v691, %v682
        %v712 = vpack.c.bf16 %v695, %v686
        %v713 = vpack.c.bf16 %v700, %v700
        %v714 = vpack.c.bf16 %v704, %v704
        %v716 = vsel %vm472, %v713, 0
        %v719 = vsel %vm472, %v714, 0
        %721 = vmatprep.subr.bf16.mxu0 %v706
        %722 = vmatpush1.bf16.msra.mxu0 %v705
        %723 = vmatprep.subr.bf16.mxu0 %v708
        %724 = vmatpush1.bf16.msra.mxu0 %v707
        %725 = vmatprep.subr.bf16.mxu0 %v710
        %726 = vmatpush1.bf16.msra.mxu0 %v709
        %727 = vmatprep.subr.bf16.mxu0 %v712
        %728 = vmatpush1.bf16.msra.mxu0 %v711
        %729 = vmatprep.subr.bf16.mxu0 %v719
        %730 = vmatpush1.bf16.msra.mxu0 %v716
        %731 = vmatprep.subr.bf16.mxu0 0
        %732 = vmatpush1.bf16.msra.mxu0 0
        %733 = vmatprep.subr.bf16.mxu0 0
        %734 = vmatpush1.bf16.msra.mxu0 0
        %735 = vmatprep.subr.bf16.mxu0 0
        %736 = vmatpush1.bf16.msra.mxu0 0
        %737 = vmatprep.subr.bf16.mxu0 0
        %738 = vmatpush1.bf16.msra.mxu0 0
        %739 = vmatprep.subr.bf16.mxu0 0
        %740 = vmatpush1.bf16.msra.mxu0 0
        %741 = vmatprep.subr.bf16.mxu0 0
        %742 = vmatpush1.bf16.msra.mxu0 0
        %743 = vmatprep.subr.bf16.mxu0 0
        %744 = vmatpush1.bf16.msra.mxu0 0
        %745 = vmatprep.subr.bf16.mxu0 0
        %746 = vmatpush1.bf16.msra.mxu0 0
        %747 = vmatprep.subr.bf16.mxu0 0
        %748 = vmatpush1.bf16.msra.mxu0 0
        %749 = vmatprep.subr.bf16.mxu0 0
        %750 = vmatpush1.bf16.msra.mxu0 0
        %751 = vmatprep.subr.bf16.mxu0 0
        %752 = vmatpush1.bf16.msra.mxu0 0
        %753 = vmatprep.mubr.bf16.mxu0 0
        %754 = vmatmul.mubr.bf16.gmra.mrb[0].mxu0 %v467
        %v755 = vpop.f32.mrb[0].mxu0
        %v756 = vadd.f32 %v438, %v755
        %v757 = vpop.f32.mrb[0].mxu0
        %v758 = vadd.f32 %v438, %v757
        %v759 = vpop.f32.mrb[0].mxu0
        %v760 = vadd.f32 %v443, %v759
        %v761 = vpop.f32.mrb[0].mxu0
        %v762 = vadd.f32 %v443, %v761
        %763 = vmatprep.mubr.bf16.mxu0 0
        %764 = vmatmul.mubr.bf16.gmra.mrb[0].mxu0 %v470
        %v765 = vpop.f32.mrb[0].mxu0
        %v766 = vadd.f32 %v448, %v765
        %v767 = vpop.f32.mrb[0].mxu0
        %v768 = vadd.f32 %v448, %v767
        %v769 = vpop.f32.mrb[0].mxu0
        %v770 = vadd.f32 %v453, %v769
        %v771 = vpop.f32.mrb[0].mxu0
        %v772 = vadd.f32 %v453, %v771
        %773 = vdwg.mxu0
        %v774 = vmax.f32 %v756, 0.0
        %v775 = vmax.f32 %v758, 0.0
        %v776 = vmax.f32 %v760, 0.0
        %v777 = vmax.f32 %v762, 0.0
        %v778 = vmax.f32 %v766, 0.0
        %v779 = vmax.f32 %v768, 0.0
        %v780 = vmax.f32 %v770, 0.0
        %v781 = vmax.f32 %v772, 0.0
        %v782 = vpack.c.bf16 %v776, %v774
        %v783 = vpack.c.bf16 %v777, %v775
        %v784 = vpack.c.bf16 %v780, %v778
        %v785 = vpack.c.bf16 %v781, %v779
        %786 = vmatprep.subr.bf16.mxu0 %v783
        %787 = vmatpush1.bf16.msra.mxu0 %v782
        %788 = vmatprep.subr.bf16.mxu0 %v785
        %789 = vmatpush1.bf16.msra.mxu0 %v784
        %790 = vmatprep.subr.bf16.mxu0 0
        %791 = vmatpush1.bf16.msra.mxu0 0
        %792 = vmatprep.subr.bf16.mxu0 0
        %793 = vmatpush1.bf16.msra.mxu0 0
        %794 = vmatprep.subr.bf16.mxu0 0
        %795 = vmatpush1.bf16.msra.mxu0 0
        %796 = vmatprep.subr.bf16.mxu0 0
        %797 = vmatpush1.bf16.msra.mxu0 0
        %798 = vmatprep.subr.bf16.mxu0 0
        %799 = vmatpush1.bf16.msra.mxu0 0
        %800 = vmatprep.subr.bf16.mxu0 0
        %801 = vmatpush1.bf16.msra.mxu0 0
        %802 = vmatprep.subr.bf16.mxu0 0
        %803 = vmatpush1.bf16.msra.mxu0 0
        %804 = vmatprep.subr.bf16.mxu0 0
        %805 = vmatpush1.bf16.msra.mxu0 0
        %806 = vmatprep.subr.bf16.mxu0 0
        %807 = vmatpush1.bf16.msra.mxu0 0
        %808 = vmatprep.subr.bf16.mxu0 0
        %809 = vmatpush1.bf16.msra.mxu0 0
        %810 = vmatprep.subr.bf16.mxu0 0
        %811 = vmatpush1.bf16.msra.mxu0 0
        %812 = vmatprep.subr.bf16.mxu0 0
        %813 = vmatpush1.bf16.msra.mxu0 0
        %814 = vmatprep.subr.bf16.mxu0 0
        %815 = vmatpush1.bf16.msra.mxu0 0
        %816 = vmatprep.subr.bf16.mxu0 0
        %817 = vmatpush1.bf16.msra.mxu0 0
        %818 = vmatprep.mubr.bf16.mxu0 0
        %819 = vmatmul.mubr.bf16.gmra.mrb[0].mxu0 %v546
        %v820 = vpop.f32.mrb[0].mxu0
        %v821 = vadd.f32 0.0, %v820
        %v822 = vpop.f32.mrb[0].mxu0
        %v823 = vadd.f32 0.0, %v822
        %v824 = vpop.f32.mrb[0].mxu0
        %v825 = vpop.f32.mrb[0].mxu0
        %826 = vdwg.mxu0
        %s827 = scalar_lea.vmem %s235, 1 [#allocation2]
        %v828 = vld [vmem:[%s827] ss:$4 sm:$0x3]
        %v830 = vlaneseq
        %v831 = vshrl.u32 %v830, 7
        %v832 = vsub.s32 0, %v831
        %v833 = vrot.slane %v828, %v832
        %v834 = vlaneseq
        %v835 = vshrl.u32 %v834, 7
        %v836 = vsub.s32 1, %v835
        %v837 = vrot.slane %v828, %v836
        %v840 = vmul.f32 %v821, %v833
        %v841 = vmul.f32 %v823, %v837
        %v842 = vadd.f32 %v603, %v840
        %v843 = vadd.f32 %v604, %v841
        %845 = vrot.lane.b32.xlu0 %v843, 15
        %v846 = vpop.permute.xlu0 %845
        %849 = vrot.lane.b32.xlu0 %v842, 15
        %v850 = vpop.permute.xlu0 %849
        %v851 = vsel %vm326, %v850, %v846
        %v854 = vsel %vm326, %v846, %v850
        %855 = vrot.lane.b32.xlu0 %v842, 127
        %v856 = vpop.permute.xlu0 %855
        %857 = vrot.lane.b32.xlu0 %v843, 127
        %v858 = vpop.permute.xlu0 %857
        %v859 = vsel %vm335, %v856, %v858
        %v863 = vsel %vm335, %v858, %v856
        %v864 = vsel %vm315, %v854, %v859
        %v865 = vsel %vm316, %v851, %v863
        %866 = vrot.lane.b32.xlu0 %v842, 113
        %v867 = vpop.permute.xlu0 %866
        %868 = vrot.lane.b32.xlu0 %v843, 113
        %v869 = vpop.permute.xlu0 %868
        %v870 = vsel %vm347, %v867, %v869
        %v874 = vsel %vm347, %v869, %v867
        %875 = vrot.lane.b32.xlu0 %v843, 1
        %v876 = vpop.permute.xlu0 %875
        %878 = vrot.lane.b32.xlu0 %v842, 1
        %v879 = vpop.permute.xlu0 %878
        %v880 = vsel %vm358, %v879, %v876
        %v883 = vsel %vm358, %v876, %v879
        %v884 = vsel %vm313, %v870, %v883
        %v885 = vsel %vm314, %v874, %v880
        %887 = vrot.lane.b32.xlu0 %v885, 16
        %v888 = vpop.permute.xlu0 %887
        %891 = vrot.lane.b32.xlu0 %v884, 16
        %v892 = vpop.permute.xlu0 %891
        %v893 = vsel %vm372, %v892, %v888
        %v896 = vsel %vm372, %v888, %v892
        %897 = vrot.lane.b32.xlu0 %v843, 16
        %v898 = vpop.permute.xlu0 %897
        %900 = vrot.lane.b32.xlu0 %v842, 16
        %v901 = vpop.permute.xlu0 %900
        %v902 = vsel %vm372, %v901, %v898
        %v905 = vsel %vm372, %v898, %v901
        %907 = vrot.lane.b32.xlu0 %v865, 16
        %v908 = vpop.permute.xlu0 %907
        %911 = vrot.lane.b32.xlu0 %v864, 16
        %v912 = vpop.permute.xlu0 %911
        %v913 = vsel %vm372, %v912, %v908
        %v916 = vsel %vm372, %v908, %v912
        %917 = vrot.lane.b32.xlu0 %v884, 112
        %v918 = vpop.permute.xlu0 %917
        %919 = vrot.lane.b32.xlu0 %v885, 112
        %v920 = vpop.permute.xlu0 %919
        %v921 = vsel %vm401, %v918, %v920
        %v925 = vsel %vm401, %v920, %v918
        %926 = vrot.lane.b32.xlu0 %v842, 112
        %v927 = vpop.permute.xlu0 %926
        %928 = vrot.lane.b32.xlu0 %v843, 112
        %v929 = vpop.permute.xlu0 %928
        %v930 = vsel %vm401, %v927, %v929
        %v934 = vsel %vm401, %v929, %v927
        %935 = vrot.lane.b32.xlu0 %v864, 112
        %v936 = vpop.permute.xlu0 %935
        %937 = vrot.lane.b32.xlu0 %v865, 112
        %v938 = vpop.permute.xlu0 %937
        %v939 = vsel %vm401, %v936, %v938
        %v943 = vsel %vm401, %v938, %v936
        %v944 = vpack.c.bf16 %v905, %v896
        %v945 = vpack.c.bf16 %v902, %v893
        %v946 = vpack.c.bf16 %v884, %v916
        %v947 = vpack.c.bf16 %v885, %v913
        %v948 = vpack.c.bf16 %v864, %v842
        %v949 = vpack.c.bf16 %v865, %v843
        %v950 = vpack.c.bf16 %v930, %v921
        %v951 = vpack.c.bf16 %v934, %v925
        %v952 = vpack.c.bf16 %v939, %v939
        %v953 = vpack.c.bf16 %v943, %v943
        %v955 = vsel %vm472, %v952, 0
        %v958 = vsel %vm472, %v953, 0
        %960 = vmatprep.subr.bf16.mxu0 %v945
        %961 = vmatpush1.bf16.msra.mxu0 %v944
        %962 = vmatprep.subr.bf16.mxu0 %v947
        %963 = vmatpush1.bf16.msra.mxu0 %v946
        %964 = vmatprep.subr.bf16.mxu0 %v949
        %965 = vmatpush1.bf16.msra.mxu0 %v948
        %966 = vmatprep.subr.bf16.mxu0 %v951
        %967 = vmatpush1.bf16.msra.mxu0 %v950
        %968 = vmatprep.subr.bf16.mxu0 %v958
        %969 = vmatpush1.bf16.msra.mxu0 %v955
        %970 = vmatprep.subr.bf16.mxu0 0
        %971 = vmatpush1.bf16.msra.mxu0 0
        %972 = vmatprep.subr.bf16.mxu0 0
        %973 = vmatpush1.bf16.msra.mxu0 0
        %974 = vmatprep.subr.bf16.mxu0 0
        %975 = vmatpush1.bf16.msra.mxu0 0
        %976 = vmatprep.subr.bf16.mxu0 0
        %977 = vmatpush1.bf16.msra.mxu0 0
        %978 = vmatprep.subr.bf16.mxu0 0
        %979 = vmatpush1.bf16.msra.mxu0 0
        %980 = vmatprep.subr.bf16.mxu0 0
        %981 = vmatpush1.bf16.msra.mxu0 0
        %982 = vmatprep.subr.bf16.mxu0 0
        %983 = vmatpush1.bf16.msra.mxu0 0
        %984 = vmatprep.subr.bf16.mxu0 0
        %985 = vmatpush1.bf16.msra.mxu0 0
        %986 = vmatprep.subr.bf16.mxu0 0
        %987 = vmatpush1.bf16.msra.mxu0 0
        %988 = vmatprep.subr.bf16.mxu0 0
        %989 = vmatpush1.bf16.msra.mxu0 0
        %990 = vmatprep.subr.bf16.mxu0 0
        %991 = vmatpush1.bf16.msra.mxu0 0
        %992 = vmatprep.mubr.bf16.mxu0 0
        %993 = vmatmul.mubr.bf16.gmra.mrb[0].mxu0 %v467
        %v994 = vpop.f32.mrb[0].mxu0
        %v995 = vadd.f32 %v438, %v994
        %v996 = vpop.f32.mrb[0].mxu0
        %v997 = vadd.f32 %v438, %v996
        %v998 = vpop.f32.mrb[0].mxu0
        %v999 = vadd.f32 %v443, %v998
        %v1000 = vpop.f32.mrb[0].mxu0
        %v1001 = vadd.f32 %v443, %v1000
        %1002 = vmatprep.mubr.bf16.mxu0 0
        %1003 = vmatmul.mubr.bf16.gmra.mrb[0].mxu0 %v470
        %v1004 = vpop.f32.mrb[0].mxu0
        %v1005 = vadd.f32 %v448, %v1004
        %v1006 = vpop.f32.mrb[0].mxu0
        %v1007 = vadd.f32 %v448, %v1006
        %v1008 = vpop.f32.mrb[0].mxu0
        %v1009 = vadd.f32 %v453, %v1008
        %v1010 = vpop.f32.mrb[0].mxu0
        %v1011 = vadd.f32 %v453, %v1010
        %1012 = vdwg.mxu0
        %v1013 = vmax.f32 %v995, 0.0
        %v1014 = vmax.f32 %v997, 0.0
        %v1015 = vmax.f32 %v999, 0.0
        %v1016 = vmax.f32 %v1001, 0.0
        %v1017 = vmax.f32 %v1005, 0.0
        %v1018 = vmax.f32 %v1007, 0.0
        %v1019 = vmax.f32 %v1009, 0.0
        %v1020 = vmax.f32 %v1011, 0.0
        %v1021 = vpack.c.bf16 %v1015, %v1013
        %v1022 = vpack.c.bf16 %v1016, %v1014
        %v1023 = vpack.c.bf16 %v1019, %v1017
        %v1024 = vpack.c.bf16 %v1020, %v1018
        %1025 = vmatprep.subr.bf16.mxu0 %v1022
        %1026 = vmatpush1.bf16.msra.mxu0 %v1021
        %1027 = vmatprep.subr.bf16.mxu0 %v1024
        %1028 = vmatpush1.bf16.msra.mxu0 %v1023
        %1029 = vmatprep.subr.bf16.mxu0 0
        %1030 = vmatpush1.bf16.msra.mxu0 0
        %1031 = vmatprep.subr.bf16.mxu0 0
        %1032 = vmatpush1.bf16.msra.mxu0 0
        %1033 = vmatprep.subr.bf16.mxu0 0
        %1034 = vmatpush1.bf16.msra.mxu0 0
        %1035 = vmatprep.subr.bf16.mxu0 0
        %1036 = vmatpush1.bf16.msra.mxu0 0
        %1037 = vmatprep.subr.bf16.mxu0 0
        %1038 = vmatpush1.bf16.msra.mxu0 0
        %1039 = vmatprep.subr.bf16.mxu0 0
        %1040 = vmatpush1.bf16.msra.mxu0 0
        %1041 = vmatprep.subr.bf16.mxu0 0
        %1042 = vmatpush1.bf16.msra.mxu0 0
        %1043 = vmatprep.subr.bf16.mxu0 0
        %1044 = vmatpush1.bf16.msra.mxu0 0
        %1045 = vmatprep.subr.bf16.mxu0 0
        %1046 = vmatpush1.bf16.msra.mxu0 0
        %1047 = vmatprep.subr.bf16.mxu0 0
        %1048 = vmatpush1.bf16.msra.mxu0 0
        %1049 = vmatprep.subr.bf16.mxu0 0
        %1050 = vmatpush1.bf16.msra.mxu0 0
        %1051 = vmatprep.subr.bf16.mxu0 0
        %1052 = vmatpush1.bf16.msra.mxu0 0
        %1053 = vmatprep.subr.bf16.mxu0 0
        %1054 = vmatpush1.bf16.msra.mxu0 0
        %1055 = vmatprep.subr.bf16.mxu0 0
        %1056 = vmatpush1.bf16.msra.mxu0 0
        %1057 = vmatprep.mubr.bf16.mxu0 0
        %1058 = vmatmul.mubr.bf16.gmra.mrb[0].mxu0 %v546
        %v1059 = vpop.f32.mrb[0].mxu0
        %v1060 = vadd.f32 0.0, %v1059
        %v1061 = vpop.f32.mrb[0].mxu0
        %v1062 = vadd.f32 0.0, %v1061
        %v1063 = vpop.f32.mrb[0].mxu0
        %v1064 = vpop.f32.mrb[0].mxu0
        %1065 = vdwg.mxu0
        %s1066 = scalar_lea.vmem %s235, 2 [#allocation2]
        %v1067 = vld [vmem:[%s1066] ss:$4 sm:$0x3]
        %v1069 = vlaneseq
        %v1070 = vshrl.u32 %v1069, 7
        %v1071 = vsub.s32 0, %v1070
        %v1072 = vrot.slane %v1067, %v1071
        %v1073 = vlaneseq
        %v1074 = vshrl.u32 %v1073, 7
        %v1075 = vsub.s32 1, %v1074
        %v1076 = vrot.slane %v1067, %v1075
        %v1079 = vmul.f32 %v1060, %v1072
        %v1080 = vmul.f32 %v1062, %v1076
        %v1081 = vadd.f32 %v842, %v1079
        %v1082 = vadd.f32 %v843, %v1080
        %1084 = vrot.lane.b32.xlu0 %v1082, 15
        %v1085 = vpop.permute.xlu0 %1084
        %1088 = vrot.lane.b32.xlu0 %v1081, 15
        %v1089 = vpop.permute.xlu0 %1088
        %v1090 = vsel %vm326, %v1089, %v1085
        %v1093 = vsel %vm326, %v1085, %v1089
        %1094 = vrot.lane.b32.xlu0 %v1081, 127
        %v1095 = vpop.permute.xlu0 %1094
        %1096 = vrot.lane.b32.xlu0 %v1082, 127
        %v1097 = vpop.permute.xlu0 %1096
        %v1098 = vsel %vm335, %v1095, %v1097
        %v1102 = vsel %vm335, %v1097, %v1095
        %v1103 = vsel %vm315, %v1093, %v1098
        %v1104 = vsel %vm316, %v1090, %v1102
        %1105 = vrot.lane.b32.xlu0 %v1081, 113
        %v1106 = vpop.permute.xlu0 %1105
        %1107 = vrot.lane.b32.xlu0 %v1082, 113
        %v1108 = vpop.permute.xlu0 %1107
        %v1109 = vsel %vm347, %v1106, %v1108
        %v1113 = vsel %vm347, %v1108, %v1106
        %1114 = vrot.lane.b32.xlu0 %v1082, 1
        %v1115 = vpop.permute.xlu0 %1114
        %1117 = vrot.lane.b32.xlu0 %v1081, 1
        %v1118 = vpop.permute.xlu0 %1117
        %v1119 = vsel %vm358, %v1118, %v1115
        %v1122 = vsel %vm358, %v1115, %v1118
        %v1123 = vsel %vm313, %v1109, %v1122
        %v1124 = vsel %vm314, %v1113, %v1119
        %1126 = vrot.lane.b32.xlu0 %v1124, 16
        %v1127 = vpop.permute.xlu0 %1126
        %1130 = vrot.lane.b32.xlu0 %v1123, 16
        %v1131 = vpop.permute.xlu0 %1130
        %v1132 = vsel %vm372, %v1131, %v1127
        %v1135 = vsel %vm372, %v1127, %v1131
        %1136 = vrot.lane.b32.xlu0 %v1082, 16
        %v1137 = vpop.permute.xlu0 %1136
        %1139 = vrot.lane.b32.xlu0 %v1081, 16
        %v1140 = vpop.permute.xlu0 %1139
        %v1141 = vsel %vm372, %v1140, %v1137
        %v1144 = vsel %vm372, %v1137, %v1140
        %1146 = vrot.lane.b32.xlu0 %v1104, 16
        %v1147 = vpop.permute.xlu0 %1146
        %1150 = vrot.lane.b32.xlu0 %v1103, 16
        %v1151 = vpop.permute.xlu0 %1150
        %v1152 = vsel %vm372, %v1151, %v1147
        %v1155 = vsel %vm372, %v1147, %v1151
        %1156 = vrot.lane.b32.xlu0 %v1123, 112
        %v1157 = vpop.permute.xlu0 %1156
        %1158 = vrot.lane.b32.xlu0 %v1124, 112
        %v1159 = vpop.permute.xlu0 %1158
        %v1160 = vsel %vm401, %v1157, %v1159
        %v1164 = vsel %vm401, %v1159, %v1157
        %1165 = vrot.lane.b32.xlu0 %v1081, 112
        %v1166 = vpop.permute.xlu0 %1165
        %1167 = vrot.lane.b32.xlu0 %v1082, 112
        %v1168 = vpop.permute.xlu0 %1167
        %v1169 = vsel %vm401, %v1166, %v1168
        %v1173 = vsel %vm401, %v1168, %v1166
        %1174 = vrot.lane.b32.xlu0 %v1103, 112
        %v1175 = vpop.permute.xlu0 %1174
        %1176 = vrot.lane.b32.xlu0 %v1104, 112
        %v1177 = vpop.permute.xlu0 %1176
        %v1178 = vsel %vm401, %v1175, %v1177
        %v1182 = vsel %vm401, %v1177, %v1175
        %v1183 = vpack.c.bf16 %v1144, %v1135
        %v1184 = vpack.c.bf16 %v1141, %v1132
        %v1185 = vpack.c.bf16 %v1123, %v1155
        %v1186 = vpack.c.bf16 %v1124, %v1152
        %v1187 = vpack.c.bf16 %v1103, %v1081
        %v1188 = vpack.c.bf16 %v1104, %v1082
        %v1189 = vpack.c.bf16 %v1169, %v1160
        %v1190 = vpack.c.bf16 %v1173, %v1164
        %v1191 = vpack.c.bf16 %v1178, %v1178
        %v1192 = vpack.c.bf16 %v1182, %v1182
        %v1194 = vsel %vm472, %v1191, 0
        %v1197 = vsel %vm472, %v1192, 0
        %1199 = vmatprep.subr.bf16.mxu0 %v1184
        %1200 = vmatpush1.bf16.msra.mxu0 %v1183
        %1201 = vmatprep.subr.bf16.mxu0 %v1186
        %1202 = vmatpush1.bf16.msra.mxu0 %v1185
        %1203 = vmatprep.subr.bf16.mxu0 %v1188
        %1204 = vmatpush1.bf16.msra.mxu0 %v1187
        %1205 = vmatprep.subr.bf16.mxu0 %v1190
        %1206 = vmatpush1.bf16.msra.mxu0 %v1189
        %1207 = vmatprep.subr.bf16.mxu0 %v1197
        %1208 = vmatpush1.bf16.msra.mxu0 %v1194
        %1209 = vmatprep.subr.bf16.mxu0 0
        %1210 = vmatpush1.bf16.msra.mxu0 0
        %1211 = vmatprep.subr.bf16.mxu0 0
        %1212 = vmatpush1.bf16.msra.mxu0 0
        %1213 = vmatprep.subr.bf16.mxu0 0
        %1214 = vmatpush1.bf16.msra.mxu0 0
        %1215 = vmatprep.subr.bf16.mxu0 0
        %1216 = vmatpush1.bf16.msra.mxu0 0
        %1217 = vmatprep.subr.bf16.mxu0 0
        %1218 = vmatpush1.bf16.msra.mxu0 0
        %1219 = vmatprep.subr.bf16.mxu0 0
        %1220 = vmatpush1.bf16.msra.mxu0 0
        %1221 = vmatprep.subr.bf16.mxu0 0
        %1222 = vmatpush1.bf16.msra.mxu0 0
        %1223 = vmatprep.subr.bf16.mxu0 0
        %1224 = vmatpush1.bf16.msra.mxu0 0
        %1225 = vmatprep.subr.bf16.mxu0 0
        %1226 = vmatpush1.bf16.msra.mxu0 0
        %1227 = vmatprep.subr.bf16.mxu0 0
        %1228 = vmatpush1.bf16.msra.mxu0 0
        %1229 = vmatprep.subr.bf16.mxu0 0
        %1230 = vmatpush1.bf16.msra.mxu0 0
        %1231 = vmatprep.mubr.bf16.mxu0 0
        %1232 = vmatmul.mubr.bf16.gmra.mrb[0].mxu0 %v467
        %v1233 = vpop.f32.mrb[0].mxu0
        %v1234 = vadd.f32 %v438, %v1233
        %v1235 = vpop.f32.mrb[0].mxu0
        %v1236 = vadd.f32 %v438, %v1235
        %v1237 = vpop.f32.mrb[0].mxu0
        %v1238 = vadd.f32 %v443, %v1237
        %v1239 = vpop.f32.mrb[0].mxu0
        %v1240 = vadd.f32 %v443, %v1239
        %1241 = vmatprep.mubr.bf16.mxu0 0
        %1242 = vmatmul.mubr.bf16.gmra.mrb[0].mxu0 %v470
        %v1243 = vpop.f32.mrb[0].mxu0
        %v1244 = vadd.f32 %v448, %v1243
        %v1245 = vpop.f32.mrb[0].mxu0
        %v1246 = vadd.f32 %v448, %v1245
        %v1247 = vpop.f32.mrb[0].mxu0
        %v1248 = vadd.f32 %v453, %v1247
        %v1249 = vpop.f32.mrb[0].mxu0
        %v1250 = vadd.f32 %v453, %v1249
        %1251 = vdwg.mxu0
        %v1252 = vmax.f32 %v1234, 0.0
        %v1253 = vmax.f32 %v1236, 0.0
        %v1254 = vmax.f32 %v1238, 0.0
        %v1255 = vmax.f32 %v1240, 0.0
        %v1256 = vmax.f32 %v1244, 0.0
        %v1257 = vmax.f32 %v1246, 0.0
        %v1258 = vmax.f32 %v1248, 0.0
        %v1259 = vmax.f32 %v1250, 0.0
        %v1260 = vpack.c.bf16 %v1254, %v1252
        %v1261 = vpack.c.bf16 %v1255, %v1253
        %v1262 = vpack.c.bf16 %v1258, %v1256
        %v1263 = vpack.c.bf16 %v1259, %v1257
        %1264 = vmatprep.subr.bf16.mxu0 %v1261
        %1265 = vmatpush1.bf16.msra.mxu0 %v1260
        %1266 = vmatprep.subr.bf16.mxu0 %v1263
        %1267 = vmatpush1.bf16.msra.mxu0 %v1262
        %1268 = vmatprep.subr.bf16.mxu0 0
        %1269 = vmatpush1.bf16.msra.mxu0 0
        %1270 = vmatprep.subr.bf16.mxu0 0
        %1271 = vmatpush1.bf16.msra.mxu0 0
        %1272 = vmatprep.subr.bf16.mxu0 0
        %1273 = vmatpush1.bf16.msra.mxu0 0
        %1274 = vmatprep.subr.bf16.mxu0 0
        %1275 = vmatpush1.bf16.msra.mxu0 0
        %1276 = vmatprep.subr.bf16.mxu0 0
        %1277 = vmatpush1.bf16.msra.mxu0 0
        %1278 = vmatprep.subr.bf16.mxu0 0
        %1279 = vmatpush1.bf16.msra.mxu0 0
        %1280 = vmatprep.subr.bf16.mxu0 0
        %1281 = vmatpush1.bf16.msra.mxu0 0
        %1282 = vmatprep.subr.bf16.mxu0 0
        %1283 = vmatpush1.bf16.msra.mxu0 0
        %1284 = vmatprep.subr.bf16.mxu0 0
        %1285 = vmatpush1.bf16.msra.mxu0 0
        %1286 = vmatprep.subr.bf16.mxu0 0
        %1287 = vmatpush1.bf16.msra.mxu0 0
        %1288 = vmatprep.subr.bf16.mxu0 0
        %1289 = vmatpush1.bf16.msra.mxu0 0
        %1290 = vmatprep.subr.bf16.mxu0 0
        %1291 = vmatpush1.bf16.msra.mxu0 0
        %1292 = vmatprep.subr.bf16.mxu0 0
        %1293 = vmatpush1.bf16.msra.mxu0 0
        %1294 = vmatprep.subr.bf16.mxu0 0
        %1295 = vmatpush1.bf16.msra.mxu0 0
        %1296 = vmatprep.mubr.bf16.mxu0 0
        %1297 = vmatmul.mubr.bf16.gmra.mrb[0].mxu0 %v546
        %v1298 = vpop.f32.mrb[0].mxu0
        %v1299 = vadd.f32 0.0, %v1298
        %v1300 = vpop.f32.mrb[0].mxu0
        %v1301 = vadd.f32 0.0, %v1300
        %v1302 = vpop.f32.mrb[0].mxu0
        %v1303 = vpop.f32.mrb[0].mxu0
        %1304 = vdwg.mxu0
        %s1305 = scalar_lea.vmem %s235, 3 [#allocation2]
        %v1306 = vld [vmem:[%s1305] ss:$4 sm:$0x3]
        %v1308 = vlaneseq
        %v1309 = vshrl.u32 %v1308, 7
        %v1310 = vsub.s32 0, %v1309
        %v1311 = vrot.slane %v1306, %v1310
        %v1312 = vlaneseq
        %v1313 = vshrl.u32 %v1312, 7
        %v1314 = vsub.s32 1, %v1313
        %v1315 = vrot.slane %v1306, %v1314
        %v1318 = vmul.f32 %v1299, %v1311
        %v1319 = vmul.f32 %v1301, %v1315
        %v1320 = vadd.f32 %v1081, %v1318
        %v1321 = vadd.f32 %v1082, %v1319
        %1322 = vst [vmem:[%s270] sm:$0xff] %v1320
        %1323 = vst [vmem:[%s270 + $0x8] sm:$0xff] %v1321
        %s1324 = sand.u32 %s146, 1
        %s1325 = scalar_lea.sflag [#allocation4], %s1324
        %s1326 = sand.u32 %s146, 1
        %s1327 = smul.addr %s1326, 16
        %s1328 = scalar_lea.vmem [#allocation7], %s1327
        // Predicated region
        $region49: #{tpu_custom_call.1} parent=39 // pred_check
          %p1329 = pneg %p156
        $region50: #{tpu_custom_call.1} parent=39 // pred_check_branch
          %1331 = sbr.rel (%p1329) target = $region52
        $region51: #{tpu_custom_call.1} parent=39 // pred_region
          %s1333 = ssub.s32 256, 256
          %1334 = vsyncadd %s1325, %s1333
          %s1335 = smul.addr %s23, 2
          %s1336 = smul.addr %s1335, 128
          %s1337 = scalar_lea.hbm %s5, %s1336
          %s1339 = sshll.u32 %s1328, 4
          %s1340 = int_to_ptr.vmem [resolvable:$true] %s1339
          %1342 = dma.vmem_to_hbm [thread:$0]  %s1340, 256, %s1337, %s1325
        $region52: #{tpu_custom_call.1} parent=39 // pred_fallthru
          _
      $region40: #{tpu_custom_call.1} parent=5 // pred_fallthru
        _
      %p1343 = scmp.le.s32.totalorder 2, %s18
      // Predicated region
      $region53: #{tpu_custom_call.1} parent=5 // pred_check
        %p1344 = pneg %p1343
      $region54: #{tpu_custom_call.1} parent=5 // pred_check_branch
        %1346 = sbr.rel (%p1344) target = $region56
      $region55: #{tpu_custom_call.1} parent=5 // pred_region
        %s1347 = ssub.s32 %s18, 2
        // Predicated region
        $region57: #{tpu_custom_call.1} parent=55 // pred_check
          %p1348 = pneg %p162
        $region58: #{tpu_custom_call.1} parent=55 // pred_check_branch
          %1350 = sbr.rel (%p1348) target = $region60
        $region59: #{tpu_custom_call.1} parent=55 // pred_region
          %s1351 = sand.u32 %s147, 1
          %s1352 = scalar_lea.sflag [#allocation4], %s1351
          %s1353 = sand.u32 %s147, 1
          %s1354 = smul.addr %s1353, 16
          %s1355 = scalar_lea.vmem [#allocation7], %s1354
          %1356 = dma.done %s1352, 256
        $region60: #{tpu_custom_call.1} parent=55 // pred_fallthru
          _
      $region56: #{tpu_custom_call.1} parent=5 // pred_fallthru
        _
    $region6: #{tpu_custom_call.1} parent=1 // loop_footer
      %s22 = sadd.s32 1, %s18
    $region7: #{tpu_custom_call.1} parent=1 // loop_footer_branch
      %17 = sbr.rel target = $region3
    $region8: #{tpu_custom_call.1} parent=1 // loop_exit
      _
    %1357 = vsyncpa [#allocation3], 1
    %s1358 = scalar_lea.sflag [#allocation3], 1
    %1359 = vsyncpa %s1358, 1
    %1360 = vsyncpa [#allocation6], 1
    %1361 = vsyncpa [#allocation4], 1
    %s1362 = scalar_lea.sflag [#allocation4], 1
    %1363 = vsyncpa %s1362, 1

</llo_original>
